<compile_context>
chip_gen: v6e
topology: v6e:2x2x1
jax: 0.10.0
libtpu: 0.0.40
codegen_flags: <defaults>
</compile_context>

<pallas_src>
import numpy as np
import jax
import jax.numpy as jnp
from jax.experimental import pallas as pl
from jax.experimental.pallas import tpu as pltpu


def _mlp_kernel(x_ref, w1_ref, b1_ref, w2_ref, b2_ref, w3_ref, b3_ref, o_ref):
    # Dropout == identity in eval mode.  Cast x to bf16 in-kernel (VPU) so the
    # wrapper does not emit a separate cast op around the pallas_call.
    xb = x_ref[...].astype(jnp.bfloat16)
    # Linear(F, H) + ReLU
    h1 = jnp.dot(xb, w1_ref[...], preferred_element_type=jnp.float32)
    h1 = jnp.maximum(h1 + b1_ref[...], 0.0).astype(jnp.bfloat16)
    # Linear(H, H) + ReLU   (H == F by the module's own shape constraint)
    h2 = jnp.dot(h1, w2_ref[...], preferred_element_type=jnp.float32)
    h2 = jnp.maximum(h2 + b2_ref[...], 0.0).astype(jnp.bfloat16)
    # Linear(H, O_pad) + Sigmoid   (padded lanes carry W=0, b=0 -> sliced off)
    logits = jnp.dot(h2, w3_ref[...], preferred_element_type=jnp.float32)
    logits = logits + b3_ref[...]
    o_ref[...] = jax.nn.sigmoid(logits).astype(o_ref.dtype)


def _resident_spec(shape):
    """BlockSpec for a grid-invariant (weight/bias) block: single-buffered."""
    if hasattr(pl, "Buffered"):
        try:
            return pl.BlockSpec(shape, lambda i: (0, 0),
                                pipeline_mode=pl.Buffered(1))
        except TypeError:  # older BlockSpec without pipeline_mode kwarg
            pass
    return pl.BlockSpec(shape, lambda i: (0, 0))


def _vmem_limit(footprint_bytes):
    """Only raise the scoped-VMEM limit when needed; never claim all of VMEM."""
    if footprint_bytes <= 12 * 1024 * 1024:
        return None  # default scoped limit (16 MiB v5e / 32 MiB v6e,v7x) covers it
    try:
        phys = pltpu.get_tpu_info().vmem_capacity_bytes
    except Exception:  # interpret mode / older jax
        phys = 64 * 1024 * 1024  # conservative: v7x per-TC physical VMEM
    return min(int(footprint_bytes) + (4 << 20), (phys * 7) // 8)


def sigmoid_prop_net(x, params, out_features, *, batch_tile=None,
                     core_parallel=False):
    """x: (B, F) float32.  params: bf16 (in, out) weights + f32 (1, out) biases,
    with the final layer already padded to a lane-dense (multiple-of-128) width."""
    B, F = x.shape
    w1, b1 = params["w1"], params["b1"]   # (F, H), (1, H)
    w2, b2 = params["w2"], params["b2"]   # (H, H), (1, H)
    w3, b3 = params["w3"], params["b3"]   # (H, O_pad), (1, O_pad)
    H = w1.shape[1]
    o_pad = w3.shape[1]
    assert w1.shape[0] == F and w2.shape == (H, H) and w3.shape[0] == H
    assert o_pad % 128 == 0 and out_features <= o_pad

    if batch_tile is None:
        batch_tile = B  # grid=(1,): this kernel is launch/overhead-bound small
    batch_tile = min(batch_tile, B)
    assert B % batch_tile == 0, "B must be a multiple of batch_tile"
    n_steps = B // batch_tile

    # Footprint: single-buffered resident weights (x2 slack) + double-buffered
    # f32 x/out tiles.  TODO(synk): replace residency with K-streaming
    # (memory_space=pl.ANY + pltpu.emit_pipeline) before scaling to F=H=4096.
    weight_bytes = sum(int(np.prod(a.shape)) * a.dtype.itemsize
                       for a in (w1, b1, w2, b2, w3, b3))
    tile_bytes = 2 * (batch_tile * F * 4 + batch_tile * o_pad * 4)
    footprint = 2 * weight_bytes + tile_bytes
    assert footprint <= 48 * 1024 * 1024, (
        "resident weights too large for VMEM; stream K-chunks instead")

    if n_steps == 1:
        sem = ("arbitrary",)
    elif core_parallel and hasattr(pltpu, "CORE_PARALLEL"):
        # Only CORE_PARALLEL actually shards a grid axis across v7x's two TCs
        # (plain "parallel" is a codegen no-op); note each TC then holds its
        # own resident copy of the weights in its 64 MiB VMEM.
        sem = (pltpu.CORE_PARALLEL,)
    else:
        sem = ("parallel",)

    out = pl.pallas_call(
        _mlp_kernel,
        out_shape=jax.ShapeDtypeStruct((B, o_pad), jnp.float32),
        grid_spec=pltpu.PrefetchScalarGridSpec(
            num_scalar_prefetch=0,
            grid=(n_steps,),
            in_specs=[
                pl.BlockSpec((batch_tile, F), lambda i: (i, 0)),  # x tile (f32)
                _resident_spec((F, H)),                           # w1
                _resident_spec((1, H)),                           # b1
                _resident_spec((H, H)),                           # w2
                _resident_spec((1, H)),                           # b2
                _resident_spec((H, o_pad)),                       # w3 (padded)
                _resident_spec((1, o_pad)),                       # b3 (padded)
            ],
            out_specs=pl.BlockSpec((batch_tile, o_pad), lambda i: (i, 0)),
        ),
        compiler_params=pltpu.CompilerParams(
            dimension_semantics=sem,
            vmem_limit_bytes=_vmem_limit(footprint),
        ),
    )(x, w1, b1, w2, b2, w3, b3)
    return out[:, :out_features]


def init_params(key, features_size, hidden, out_features, *, lane_pad=128):
    """Deterministic init mimicking torch.nn.Linear default U[-1/sqrt(fan_in), +].

    All param prep (transpose to (in, out), bf16 weight cast, lane-dense
    padding of the last layer) happens once here, not per forward call.
    """
    ks = jax.random.split(key, 6)

    def linear(kw, kb, fan_in, fan_out):
        bound = 1.0 / np.sqrt(fan_in)
        w = jax.random.uniform(kw, (fan_in, fan_out), jnp.float32, -bound, bound)
        b = jax.random.uniform(kb, (1, fan_out), jnp.float32, -bound, bound)
        return w, b

    w1, b1 = linear(ks[0], ks[1], features_size, hidden)
    w2, b2 = linear(ks[2], ks[3], hidden, hidden)
    w3, b3 = linear(ks[4], ks[5], hidden, out_features)

    # Pad final layer to a multiple of 128 lanes so the kernel's stores are
    # unmasked lane-dense vst; padded columns are W=0, b=0 and get sliced off.
    o_pad = max(lane_pad, ((out_features + lane_pad - 1) // lane_pad) * lane_pad)
    if o_pad != out_features:
        w3 = jnp.pad(w3, ((0, 0), (0, o_pad - out_features)))
        b3 = jnp.pad(b3, ((0, 0), (0, o_pad - out_features)))

    # bf16 weights hit the MXU's native path; biases stay f32 (added to the
    # f32 accumulator in the kernel epilogue).
    return dict(
        w1=w1.astype(jnp.bfloat16), b1=b1,
        w2=w2.astype(jnp.bfloat16), b2=b2,
        w3=w3.astype(jnp.bfloat16), b3=b3,
    )


def reference(x, p):
    """Pure-JAX reference mirroring the kernel's bf16-in / f32-accumulate math.

    Note: this is intentionally the same reduced-precision path as the kernel,
    not an exact f32 torch reference (tolerances are vs. this path).
    """
    xb = x.astype(jnp.bfloat16)
    h1 = jnp.dot(xb, p["w1"], preferred_element_type=jnp.float32) + p["b1"]
    h1 = jnp.maximum(h1, 0.0).astype(jnp.bfloat16)
    h2 = jnp.dot(h1, p["w2"], preferred_element_type=jnp.float32) + p["b2"]
    h2 = jnp.maximum(h2, 0.0).astype(jnp.bfloat16)
    logits = jnp.dot(h2, p["w3"], preferred_element_type=jnp.float32) + p["b3"]
    return jax.nn.sigmoid(logits)


if __name__ == "__main__":
    # features_size == hidden (required by the module's forward), scaled down
    # from 4096 -> 256 for the test.  output_dim = (3, 4) -> 12.
    B, F, H = 256, 256, 256
    OUT_DIM = (3, 4)
    O = int(np.prod(OUT_DIM))

    key = jax.random.PRNGKey(0)
    kx, kp = jax.random.split(key)
    x = jax.random.normal(kx, (B, F), jnp.float32)
    params = init_params(kp, F, H, O)

    fwd = jax.jit(sigmoid_prop_net, static_argnums=2)
    out = jax.block_until_ready(fwd(x, params, O))
    ref = np.asarray(jax.block_until_ready(reference(x, params)))[:, :O]

    np.testing.assert_allclose(np.asarray(out), ref, rtol=2e-3, atol=2e-3)
    assert out.shape == (B, O)

    print("KERNEL_OK")
</pallas_src>

<mosaic_0001>
module attributes {stable_mosaic.version = 11 : i64} {
  func.func @_mlp_kernel(%arg0: i32, %arg1: memref<256x256xf32, #tpu.memory_space<vmem>>, %arg2: memref<256x256xbf16, #tpu.memory_space<vmem>>, %arg3: memref<1x256xf32, #tpu.memory_space<vmem>>, %arg4: memref<256x256xbf16, #tpu.memory_space<vmem>>, %arg5: memref<1x256xf32, #tpu.memory_space<vmem>>, %arg6: memref<256x128xbf16, #tpu.memory_space<vmem>>, %arg7: memref<1x128xf32, #tpu.memory_space<vmem>>, %arg8: memref<256x128xf32, #tpu.memory_space<vmem>>) attributes {dimension_semantics = [#tpu.dimension_semantics<arbitrary>], iteration_bounds = array<i64: 1>, scalar_prefetch = 0 : i64, scratch_operands = 0 : i64, tpu.core_type = #tpu.core_type<tc>, window_params = [{transform_indices = @transform_0, window_bounds = array<i64: 256, 256>}, {pipeline_mode = #tpu.pipeline_mode<synchronous>, transform_indices = @transform_1, window_bounds = array<i64: 256, 256>}, {pipeline_mode = #tpu.pipeline_mode<synchronous>, transform_indices = @transform_2, window_bounds = array<i64: 1, 256>}, {pipeline_mode = #tpu.pipeline_mode<synchronous>, transform_indices = @transform_3, window_bounds = array<i64: 256, 256>}, {pipeline_mode = #tpu.pipeline_mode<synchronous>, transform_indices = @transform_4, window_bounds = array<i64: 1, 256>}, {pipeline_mode = #tpu.pipeline_mode<synchronous>, transform_indices = @transform_5, window_bounds = array<i64: 256, 128>}, {pipeline_mode = #tpu.pipeline_mode<synchronous>, transform_indices = @transform_6, window_bounds = array<i64: 1, 128>}, {transform_indices = @transform_7, window_bounds = array<i64: 256, 128>}]} {
    %c0 = arith.constant 0 : index
    %c0_0 = arith.constant 0 : index
    %0 = vector.load %arg1[%c0, %c0_0] : memref<256x256xf32, #tpu.memory_space<vmem>>, vector<256x256xf32>
    %1 = arith.truncf %0 : vector<256x256xf32> to vector<256x256xbf16>
    %c0_1 = arith.constant 0 : index
    %c0_2 = arith.constant 0 : index
    %2 = vector.load %arg2[%c0_1, %c0_2] : memref<256x256xbf16, #tpu.memory_space<vmem>>, vector<256x256xbf16>
    %cst = arith.constant dense<0.000000e+00> : vector<256x256xf32>
    %3 = tpu.matmul %1, %2, %cst {dimension_numbers = #tpu.dot_dimension_numbers<[1], [0], [0], [1], [0, 0, 1, 1], [], []>} : vector<256x256xbf16>, vector<256x256xbf16>, vector<256x256xf32> -> vector<256x256xf32>
    %c0_3 = arith.constant 0 : index
    %c0_4 = arith.constant 0 : index
    %4 = vector.load %arg3[%c0_3, %c0_4] : memref<1x256xf32, #tpu.memory_space<vmem>>, vector<1x256xf32>
    %5 = vector.broadcast %4 : vector<1x256xf32> to vector<256x256xf32>
    %6 = arith.addf %3, %5 : vector<256x256xf32>
    %cst_5 = arith.constant 0.000000e+00 : f32
    %7 = vector.broadcast %cst_5 : f32 to vector<256x256xf32>
    %8 = arith.maximumf %6, %7 : vector<256x256xf32>
    %9 = arith.truncf %8 : vector<256x256xf32> to vector<256x256xbf16>
    %c0_6 = arith.constant 0 : index
    %c0_7 = arith.constant 0 : index
    %10 = vector.load %arg4[%c0_6, %c0_7] : memref<256x256xbf16, #tpu.memory_space<vmem>>, vector<256x256xbf16>
    %cst_8 = arith.constant dense<0.000000e+00> : vector<256x256xf32>
    %11 = tpu.matmul %9, %10, %cst_8 {dimension_numbers = #tpu.dot_dimension_numbers<[1], [0], [0], [1], [0, 0, 1, 1], [], []>} : vector<256x256xbf16>, vector<256x256xbf16>, vector<256x256xf32> -> vector<256x256xf32>
    %c0_9 = arith.constant 0 : index
    %c0_10 = arith.constant 0 : index
    %12 = vector.load %arg5[%c0_9, %c0_10] : memref<1x256xf32, #tpu.memory_space<vmem>>, vector<1x256xf32>
    %13 = vector.broadcast %12 : vector<1x256xf32> to vector<256x256xf32>
    %14 = arith.addf %11, %13 : vector<256x256xf32>
    %cst_11 = arith.constant 0.000000e+00 : f32
    %15 = vector.broadcast %cst_11 : f32 to vector<256x256xf32>
    %16 = arith.maximumf %14, %15 : vector<256x256xf32>
    %17 = arith.truncf %16 : vector<256x256xf32> to vector<256x256xbf16>
    %c0_12 = arith.constant 0 : index
    %c0_13 = arith.constant 0 : index
    %18 = vector.load %arg6[%c0_12, %c0_13] : memref<256x128xbf16, #tpu.memory_space<vmem>>, vector<256x128xbf16>
    %cst_14 = arith.constant dense<0.000000e+00> : vector<256x128xf32>
    %19 = tpu.matmul %17, %18, %cst_14 {dimension_numbers = #tpu.dot_dimension_numbers<[1], [0], [0], [1], [0, 0, 1, 1], [], []>} : vector<256x256xbf16>, vector<256x128xbf16>, vector<256x128xf32> -> vector<256x128xf32>
    %c0_15 = arith.constant 0 : index
    %c0_16 = arith.constant 0 : index
    %20 = vector.load %arg7[%c0_15, %c0_16] : memref<1x128xf32, #tpu.memory_space<vmem>>, vector<1x128xf32>
    %21 = vector.broadcast %20 : vector<1x128xf32> to vector<256x128xf32>
    %22 = arith.addf %19, %21 : vector<256x128xf32>
    %23 = arith.negf %22 : vector<256x128xf32>
    %24 = math.exp %23 : vector<256x128xf32>
    %cst_17 = arith.constant 1.000000e+00 : f32
    %25 = vector.broadcast %cst_17 : f32 to vector<256x128xf32>
    %26 = arith.addf %25, %24 : vector<256x128xf32>
    %27 = arith.divf %25, %26 : vector<256x128xf32>
    %c0_18 = arith.constant 0 : index
    %c0_19 = arith.constant 0 : index
    %28 = vector.load %arg8[%c0_18, %c0_19] : memref<256x128xf32, #tpu.memory_space<vmem>>, vector<256x128xf32>
    tpu.vector_store %arg8[%c0_18, %c0_19], %27 {strides = array<i32>} : memref<256x128xf32, #tpu.memory_space<vmem>>, vector<256x128xf32>,
    return
  }
  func.func @transform_0(%arg0: i32) -> (i32, i32) {
    %c0_i32 = arith.constant 0 : i32
    %c0_i32_0 = arith.constant 0 : i32
    return %arg0, %c0_i32 : i32, i32
  }
  func.func @transform_1(%arg0: i32) -> (i32, i32) {
    %c0_i32 = arith.constant 0 : i32
    %c0_i32_0 = arith.constant 0 : i32
    %c0_i32_1 = arith.constant 0 : i32
    return %c0_i32, %c0_i32_0 : i32, i32
  }
  func.func @transform_2(%arg0: i32) -> (i32, i32) {
    %c0_i32 = arith.constant 0 : i32
    %c0_i32_0 = arith.constant 0 : i32
    %c0_i32_1 = arith.constant 0 : i32
    return %c0_i32, %c0_i32_0 : i32, i32
  }
  func.func @transform_3(%arg0: i32) -> (i32, i32) {
    %c0_i32 = arith.constant 0 : i32
    %c0_i32_0 = arith.constant 0 : i32
    %c0_i32_1 = arith.constant 0 : i32
    return %c0_i32, %c0_i32_0 : i32, i32
  }
  func.func @transform_4(%arg0: i32) -> (i32, i32) {
    %c0_i32 = arith.constant 0 : i32
    %c0_i32_0 = arith.constant 0 : i32
    %c0_i32_1 = arith.constant 0 : i32
    return %c0_i32, %c0_i32_0 : i32, i32
  }
  func.func @transform_5(%arg0: i32) -> (i32, i32) {
    %c0_i32 = arith.constant 0 : i32
    %c0_i32_0 = arith.constant 0 : i32
    %c0_i32_1 = arith.constant 0 : i32
    return %c0_i32, %c0_i32_0 : i32, i32
  }
  func.func @transform_6(%arg0: i32) -> (i32, i32) {
    %c0_i32 = arith.constant 0 : i32
    %c0_i32_0 = arith.constant 0 : i32
    %c0_i32_1 = arith.constant 0 : i32
    return %c0_i32, %c0_i32_0 : i32, i32
  }
  func.func @transform_7(%arg0: i32) -> (i32, i32) {
    %c0_i32 = arith.constant 0 : i32
    %c0_i32_0 = arith.constant 0 : i32
    return %arg0, %c0_i32 : i32, i32
  }
}

</mosaic_0001>

<llo_original>
// kernel: sigmoid_prop_net.1
$region0: #{sigmoid_prop_net.1}
  #allocation0 [shape = 'u32[]', space=smem, size = 0x4, offset = 0x4, fixed_abs, tag = 'smem constant byte address 0x4 - core index']
  #allocation1 [shape = 'u32[144,128]{1,0:T(1,128)}', space=vmem, size = 0x12000, scoped, tag = 'internal scratch']
  %s0 = inlined_call_operand.hbm [shape: f32[256,256], index: 0, kind: input, shape index: {}]
  %s1 = inlined_call_operand.hbm [shape: bf16[256,256], index: 1, kind: input, shape index: {}]
  %s2 = inlined_call_operand.hbm [shape: f32[1,256], index: 2, kind: input, shape index: {}]
  %s3 = inlined_call_operand.hbm [shape: bf16[256,256], index: 3, kind: input, shape index: {}]
  %s4 = inlined_call_operand.vmem [shape: f32[1,256], index: 4, kind: input, shape index: {}]
  %s5 = inlined_call_operand.hbm [shape: bf16[256,128], index: 5, kind: input, shape index: {}]
  %s6 = inlined_call_operand.vmem [shape: f32[1,128], index: 6, kind: input, shape index: {}]
  %s7 = inlined_call_operand.vmem [shape: f32[256,128], index: 7, kind: output, shape index: {}]
  %s8 = sld [smem:[#allocation0]]
  $region58: #{sigmoid_prop_net.1} parent=0
    _
  %s10 = ssub.s32 1, %s8
  %s11 = scalar_select 0, %s10, %s8
  $region1: #{sigmoid_prop_net.1} parent=0
    #allocation2 [shape = 'u8[262144]{0}', space=vmem, size = 0x40000, scoped, tag = 'input window, operand 0, single buffered']
    #allocation3 [shape = 's32[1]{0}', space=sflag, size = 0x4, scoped, tag = 'scoped memory for sigmoid_prop_net.1']
    #allocation4 [shape = 'u8[131072]{0}', space=vmem, size = 0x20000, scoped, tag = 'input window, operand 1, single buffered']
    #allocation5 [shape = 's32[1]{0}', space=sflag, size = 0x4, scoped, tag = 'scoped memory for sigmoid_prop_net.1']
    #allocation6 [shape = 'u8[1024]{0}', space=vmem, size = 0x400, scoped, tag = 'input window, operand 2, single buffered']
    #allocation7 [shape = 'u8[131072]{0}', space=vmem, size = 0x20000, scoped, tag = 'input window, operand 3, single buffered']
    #allocation8 [shape = 's32[1]{0}', space=sflag, size = 0x4, scoped, tag = 'scoped memory for sigmoid_prop_net.1']
    #allocation9 [shape = 'u8[65536]{0}', space=vmem, size = 0x10000, scoped, tag = 'input window, operand 5, single buffered']
    %12 = vsyncpa [#allocation3], 0
    %13 = vsyncpa [#allocation5], 0
    %14 = vsyncpa [#allocation8], 0
    // Predicated region
    $region2: #{sigmoid_prop_net.1} parent=1 // pred_check
      _
    $region3: #{sigmoid_prop_net.1} parent=1 // pred_check_branch
      %16 = sbr.rel (0) target = $region5
    $region4: #{sigmoid_prop_net.1} parent=1 // pred_region
      %s18 = ssub.s32 8192, 8192
      %19 = vsyncadd [#allocation3], %s18
      %s20 = sshll.u32 [#allocation2], 4
      %s21 = int_to_ptr.vmem [resolvable:$true] %s20
      %26 = dma.hbm_to_vmem [thread:$0]  %s0, 8192, %s21, [#allocation3], 256, 256, 16
    $region5: #{sigmoid_prop_net.1} parent=1 // pred_fallthru
      _
    // Predicated region
    $region6: #{sigmoid_prop_net.1} parent=1 // pred_check
      _
    $region7: #{sigmoid_prop_net.1} parent=1 // pred_check_branch
      %28 = sbr.rel (0) target = $region9
    $region8: #{sigmoid_prop_net.1} parent=1 // pred_region
      %s30 = ssub.s32 4096, 4096
      %31 = vsyncadd [#allocation5], %s30
      %s32 = sshll.u32 [#allocation4], 4
      %s33 = int_to_ptr.vmem [resolvable:$true] %s32
      %38 = dma.hbm_to_vmem [thread:$0]  %s1, 4096, %s33, [#allocation5], 128, 128, 8
    $region9: #{sigmoid_prop_net.1} parent=1 // pred_fallthru
      _
    // Predicated region
    $region10: #{sigmoid_prop_net.1} parent=1 // pred_check
      _
    $region11: #{sigmoid_prop_net.1} parent=1 // pred_check_branch
      %40 = sbr.rel (0) target = $region13
    $region12: #{sigmoid_prop_net.1} parent=1 // pred_region
      %s42 = ssub.s32 32, 32
      %43 = vsyncadd [#allocation5], %s42
      %s45 = sshll.u32 [#allocation6], 4
      %s46 = int_to_ptr.vmem [resolvable:$true] %s45
      %48 = dma.hbm_to_vmem [thread:$0]  %s2, 32, %s46, [#allocation5]
    $region13: #{sigmoid_prop_net.1} parent=1 // pred_fallthru
      _
    // Predicated region
    $region14: #{sigmoid_prop_net.1} parent=1 // pred_check
      _
    $region15: #{sigmoid_prop_net.1} parent=1 // pred_check_branch
      %50 = sbr.rel (0) target = $region17
    $region16: #{sigmoid_prop_net.1} parent=1 // pred_region
      %s52 = ssub.s32 4096, 4096
      %53 = vsyncadd [#allocation8], %s52
      %s54 = sshll.u32 [#allocation7], 4
      %s55 = int_to_ptr.vmem [resolvable:$true] %s54
      %60 = dma.hbm_to_vmem [thread:$0]  %s3, 4096, %s55, [#allocation8], 128, 128, 8
    $region17: #{sigmoid_prop_net.1} parent=1 // pred_fallthru
      _
    // Predicated region
    $region18: #{sigmoid_prop_net.1} parent=1 // pred_check
      _
    $region19: #{sigmoid_prop_net.1} parent=1 // pred_check_branch
      %62 = sbr.rel (0) target = $region21
    $region20: #{sigmoid_prop_net.1} parent=1 // pred_region
      _
    $region21: #{sigmoid_prop_net.1} parent=1 // pred_fallthru
      _
    // Predicated region
    $region22: #{sigmoid_prop_net.1} parent=1 // pred_check
      _
    $region23: #{sigmoid_prop_net.1} parent=1 // pred_check_branch
      %64 = sbr.rel (0) target = $region25
    $region24: #{sigmoid_prop_net.1} parent=1 // pred_region
      %s66 = ssub.s32 2048, 2048
      %67 = vsyncadd [#allocation8], %s66
      %s68 = sshll.u32 [#allocation9], 4
      %s69 = int_to_ptr.vmem [resolvable:$true] %s68
      %74 = dma.hbm_to_vmem [thread:$0]  %s5, 2048, %s69, [#allocation8], 64, 64, 4
    $region25: #{sigmoid_prop_net.1} parent=1 // pred_fallthru
      _
    // Predicated region
    $region26: #{sigmoid_prop_net.1} parent=1 // pred_check
      _
    $region27: #{sigmoid_prop_net.1} parent=1 // pred_check_branch
      %76 = sbr.rel (0) target = $region29
    $region28: #{sigmoid_prop_net.1} parent=1 // pred_region
      _
    $region29: #{sigmoid_prop_net.1} parent=1 // pred_fallthru
      _
    // Predicated region
    $region30: #{sigmoid_prop_net.1} parent=1 // pred_check
      _
    $region31: #{sigmoid_prop_net.1} parent=1 // pred_check_branch
      %78 = sbr.rel (0) target = $region33
    $region32: #{sigmoid_prop_net.1} parent=1 // pred_region
      %79 = dma.done [#allocation3], 8192
    $region33: #{sigmoid_prop_net.1} parent=1 // pred_fallthru
      _
    // Predicated region
    $region34: #{sigmoid_prop_net.1} parent=1 // pred_check
      _
    $region35: #{sigmoid_prop_net.1} parent=1 // pred_check_branch
      %81 = sbr.rel (0) target = $region37
    $region36: #{sigmoid_prop_net.1} parent=1 // pred_region
      %82 = dma.done [#allocation5], 4096
    $region37: #{sigmoid_prop_net.1} parent=1 // pred_fallthru
      _
    // Predicated region
    $region38: #{sigmoid_prop_net.1} parent=1 // pred_check
      _
    $region39: #{sigmoid_prop_net.1} parent=1 // pred_check_branch
      %84 = sbr.rel (0) target = $region41
    $region40: #{sigmoid_prop_net.1} parent=1 // pred_region
      %85 = dma.done [#allocation5], 32
    $region41: #{sigmoid_prop_net.1} parent=1 // pred_fallthru
      _
    // Predicated region
    $region42: #{sigmoid_prop_net.1} parent=1 // pred_check
      _
    $region43: #{sigmoid_prop_net.1} parent=1 // pred_check_branch
      %87 = sbr.rel (0) target = $region45
    $region44: #{sigmoid_prop_net.1} parent=1 // pred_region
      %88 = dma.done [#allocation8], 4096
    $region45: #{sigmoid_prop_net.1} parent=1 // pred_fallthru
      _
    // Predicated region
    $region46: #{sigmoid_prop_net.1} parent=1 // pred_check
      _
    $region47: #{sigmoid_prop_net.1} parent=1 // pred_check_branch
      %90 = sbr.rel (0) target = $region49
    $region48: #{sigmoid_prop_net.1} parent=1 // pred_region
      %91 = dma.done [#allocation8], 2048
    $region49: #{sigmoid_prop_net.1} parent=1 // pred_fallthru
      _
    %v93 = vld [vmem:[#allocation2] sm:$0xff]
    %v94 = vld [vmem:[#allocation2 + $0x8] sm:$0xff]
    %v95 = vld [vmem:[#allocation2 + $0x10] sm:$0xff]
    %v96 = vld [vmem:[#allocation2 + $0x18] sm:$0xff]
    %v97 = vld [vmem:[#allocation2 + $0x20] sm:$0xff]
    %v98 = vld [vmem:[#allocation2 + $0x28] sm:$0xff]
    %v99 = vld [vmem:[#allocation2 + $0x30] sm:$0xff]
    %v100 = vld [vmem:[#allocation2 + $0x38] sm:$0xff]
    %v101 = vld [vmem:[#allocation2 + $0x40] sm:$0xff]
    %v102 = vld [vmem:[#allocation2 + $0x48] sm:$0xff]
    %v103 = vld [vmem:[#allocation2 + $0x50] sm:$0xff]
    %v104 = vld [vmem:[#allocation2 + $0x58] sm:$0xff]
    %v105 = vld [vmem:[#allocation2 + $0x60] sm:$0xff]
    %v106 = vld [vmem:[#allocation2 + $0x68] sm:$0xff]
    %v107 = vld [vmem:[#allocation2 + $0x70] sm:$0xff]
    %v108 = vld [vmem:[#allocation2 + $0x78] sm:$0xff]
    %v109 = vld [vmem:[#allocation2 + $0x80] sm:$0xff]
    %v110 = vld [vmem:[#allocation2 + $0x88] sm:$0xff]
    %v111 = vld [vmem:[#allocation2 + $0x90] sm:$0xff]
    %v112 = vld [vmem:[#allocation2 + $0x98] sm:$0xff]
    %v113 = vld [vmem:[#allocation2 + $0xa0] sm:$0xff]
    %v114 = vld [vmem:[#allocation2 + $0xa8] sm:$0xff]
    %v115 = vld [vmem:[#allocation2 + $0xb0] sm:$0xff]
    %v116 = vld [vmem:[#allocation2 + $0xb8] sm:$0xff]
    %v117 = vld [vmem:[#allocation2 + $0xc0] sm:$0xff]
    %v118 = vld [vmem:[#allocation2 + $0xc8] sm:$0xff]
    %v119 = vld [vmem:[#allocation2 + $0xd0] sm:$0xff]
    %v120 = vld [vmem:[#allocation2 + $0xd8] sm:$0xff]
    %v121 = vld [vmem:[#allocation2 + $0xe0] sm:$0xff]
    %v122 = vld [vmem:[#allocation2 + $0xe8] sm:$0xff]
    %v123 = vld [vmem:[#allocation2 + $0xf0] sm:$0xff]
    %v124 = vld [vmem:[#allocation2 + $0xf8] sm:$0xff]
    %v125 = vld [vmem:[#allocation2 + $0x100] sm:$0xff]
    %v126 = vld [vmem:[#allocation2 + $0x108] sm:$0xff]
    %v127 = vld [vmem:[#allocation2 + $0x110] sm:$0xff]
    %v128 = vld [vmem:[#allocation2 + $0x118] sm:$0xff]
    %v129 = vld [vmem:[#allocation2 + $0x120] sm:$0xff]
    %v130 = vld [vmem:[#allocation2 + $0x128] sm:$0xff]
    %v131 = vld [vmem:[#allocation2 + $0x130] sm:$0xff]
    %v132 = vld [vmem:[#allocation2 + $0x138] sm:$0xff]
    %v133 = vld [vmem:[#allocation2 + $0x140] sm:$0xff]
    %v134 = vld [vmem:[#allocation2 + $0x148] sm:$0xff]
    %v135 = vld [vmem:[#allocation2 + $0x150] sm:$0xff]
    %v136 = vld [vmem:[#allocation2 + $0x158] sm:$0xff]
    %v137 = vld [vmem:[#allocation2 + $0x160] sm:$0xff]
    %v138 = vld [vmem:[#allocation2 + $0x168] sm:$0xff]
    %v139 = vld [vmem:[#allocation2 + $0x170] sm:$0xff]
    %v140 = vld [vmem:[#allocation2 + $0x178] sm:$0xff]
    %v141 = vld [vmem:[#allocation2 + $0x180] sm:$0xff]
    %v142 = vld [vmem:[#allocation2 + $0x188] sm:$0xff]
    %v143 = vld [vmem:[#allocation2 + $0x190] sm:$0xff]
    %v144 = vld [vmem:[#allocation2 + $0x198] sm:$0xff]
    %v145 = vld [vmem:[#allocation2 + $0x1a0] sm:$0xff]
    %v146 = vld [vmem:[#allocation2 + $0x1a8] sm:$0xff]
    %v147 = vld [vmem:[#allocation2 + $0x1b0] sm:$0xff]
    %v148 = vld [vmem:[#allocation2 + $0x1b8] sm:$0xff]
    %v149 = vld [vmem:[#allocation2 + $0x1c0] sm:$0xff]
    %v150 = vld [vmem:[#allocation2 + $0x1c8] sm:$0xff]
    %v151 = vld [vmem:[#allocation2 + $0x1d0] sm:$0xff]
    %v152 = vld [vmem:[#allocation2 + $0x1d8] sm:$0xff]
    %v153 = vld [vmem:[#allocation2 + $0x1e0] sm:$0xff]
    %v154 = vld [vmem:[#allocation2 + $0x1e8] sm:$0xff]
    %v155 = vld [vmem:[#allocation2 + $0x1f0] sm:$0xff]
    %v156 = vld [vmem:[#allocation2 + $0x1f8] sm:$0xff]
    %v157 = vpack.c.bf16 %v95, %v93
    %v158 = vpack.c.bf16 %v96, %v94
    %v159 = vpack.c.bf16 %v99, %v97
    %v160 = vpack.c.bf16 %v100, %v98
    %v161 = vpack.c.bf16 %v103, %v101
    %v162 = vpack.c.bf16 %v104, %v102
    %v163 = vpack.c.bf16 %v107, %v105
    %v164 = vpack.c.bf16 %v108, %v106
    %v165 = vpack.c.bf16 %v111, %v109
    %v166 = vpack.c.bf16 %v112, %v110
    %v167 = vpack.c.bf16 %v115, %v113
    %v168 = vpack.c.bf16 %v116, %v114
    %v169 = vpack.c.bf16 %v119, %v117
    %v170 = vpack.c.bf16 %v120, %v118
    %v171 = vpack.c.bf16 %v123, %v121
    %v172 = vpack.c.bf16 %v124, %v122
    %v173 = vpack.c.bf16 %v127, %v125
    %v174 = vpack.c.bf16 %v128, %v126
    %v175 = vpack.c.bf16 %v131, %v129
    %v176 = vpack.c.bf16 %v132, %v130
    %v177 = vpack.c.bf16 %v135, %v133
    %v178 = vpack.c.bf16 %v136, %v134
    %v179 = vpack.c.bf16 %v139, %v137
    %v180 = vpack.c.bf16 %v140, %v138
    %v181 = vpack.c.bf16 %v143, %v141
    %v182 = vpack.c.bf16 %v144, %v142
    %v183 = vpack.c.bf16 %v147, %v145
    %v184 = vpack.c.bf16 %v148, %v146
    %v185 = vpack.c.bf16 %v151, %v149
    %v186 = vpack.c.bf16 %v152, %v150
    %v187 = vpack.c.bf16 %v155, %v153
    %v188 = vpack.c.bf16 %v156, %v154
    %v189 = vld [vmem:[#allocation4] sm:$0xff]
    %v190 = vld [vmem:[#allocation4 + $0x8] sm:$0xff]
    %v191 = vld [vmem:[#allocation4 + $0x10] sm:$0xff]
    %v192 = vld [vmem:[#allocation4 + $0x18] sm:$0xff]
    %v193 = vld [vmem:[#allocation4 + $0x20] sm:$0xff]
    %v194 = vld [vmem:[#allocation4 + $0x28] sm:$0xff]
    %v195 = vld [vmem:[#allocation4 + $0x30] sm:$0xff]
    %v196 = vld [vmem:[#allocation4 + $0x38] sm:$0xff]
    %v197 = vld [vmem:[#allocation4 + $0x40] sm:$0xff]
    %v198 = vld [vmem:[#allocation4 + $0x48] sm:$0xff]
    %v199 = vld [vmem:[#allocation4 + $0x50] sm:$0xff]
    %v200 = vld [vmem:[#allocation4 + $0x58] sm:$0xff]
    %v201 = vld [vmem:[#allocation4 + $0x60] sm:$0xff]
    %v202 = vld [vmem:[#allocation4 + $0x68] sm:$0xff]
    %v203 = vld [vmem:[#allocation4 + $0x70] sm:$0xff]
    %v204 = vld [vmem:[#allocation4 + $0x78] sm:$0xff]
    %v205 = vld [vmem:[#allocation4 + $0x80] sm:$0xff]
    %v206 = vld [vmem:[#allocation4 + $0x88] sm:$0xff]
    %v207 = vld [vmem:[#allocation4 + $0x90] sm:$0xff]
    %v208 = vld [vmem:[#allocation4 + $0x98] sm:$0xff]
    %v209 = vld [vmem:[#allocation4 + $0xa0] sm:$0xff]
    %v210 = vld [vmem:[#allocation4 + $0xa8] sm:$0xff]
    %v211 = vld [vmem:[#allocation4 + $0xb0] sm:$0xff]
    %v212 = vld [vmem:[#allocation4 + $0xb8] sm:$0xff]
    %v213 = vld [vmem:[#allocation4 + $0xc0] sm:$0xff]
    %v214 = vld [vmem:[#allocation4 + $0xc8] sm:$0xff]
    %v215 = vld [vmem:[#allocation4 + $0xd0] sm:$0xff]
    %v216 = vld [vmem:[#allocation4 + $0xd8] sm:$0xff]
    %v217 = vld [vmem:[#allocation4 + $0xe0] sm:$0xff]
    %v218 = vld [vmem:[#allocation4 + $0xe8] sm:$0xff]
    %v219 = vld [vmem:[#allocation4 + $0xf0] sm:$0xff]
    %v220 = vld [vmem:[#allocation4 + $0xf8] sm:$0xff]
    %v221 = vld [vmem:[#allocation6] sm:$0x3]
    %v223 = vlaneseq
    %v224 = vshrl.u32 %v223, 7
    %v225 = vsub.s32 0, %v224
    %v226 = vrot.slane %v221, %v225
    %v227 = vlaneseq
    %v228 = vshrl.u32 %v227, 7
    %v229 = vsub.s32 1, %v228
    %v230 = vrot.slane %v221, %v229
    %v265 = vunpack.c.l.b16 %v189
    %v266 = vunpack.c.h.b16 %v189
    %v267 = vunpack.c.l.b16 %v190
    %v268 = vunpack.c.h.b16 %v190
    %v269 = vunpack.c.l.b16 %v191
    %v270 = vunpack.c.h.b16 %v191
    %v271 = vunpack.c.l.b16 %v192
    %v272 = vunpack.c.h.b16 %v192
    %v273 = vunpack.c.l.b16 %v193
    %v274 = vunpack.c.h.b16 %v193
    %v275 = vunpack.c.l.b16 %v194
    %v276 = vunpack.c.h.b16 %v194
    %v277 = vunpack.c.l.b16 %v195
    %v278 = vunpack.c.h.b16 %v195
    %v279 = vunpack.c.l.b16 %v196
    %v280 = vunpack.c.h.b16 %v196
    %v281 = vunpack.c.l.b16 %v197
    %v282 = vunpack.c.h.b16 %v197
    %v283 = vunpack.c.l.b16 %v198
    %v284 = vunpack.c.h.b16 %v198
    %v285 = vunpack.c.l.b16 %v199
    %v286 = vunpack.c.h.b16 %v199
    %v287 = vunpack.c.l.b16 %v200
    %v288 = vunpack.c.h.b16 %v200
    %v289 = vunpack.c.l.b16 %v201
    %v290 = vunpack.c.h.b16 %v201
    %v291 = vunpack.c.l.b16 %v202
    %v292 = vunpack.c.h.b16 %v202
    %v293 = vunpack.c.l.b16 %v203
    %v294 = vunpack.c.h.b16 %v203
    %v295 = vunpack.c.l.b16 %v204
    %v296 = vunpack.c.h.b16 %v204
    %v297 = vunpack.c.l.b16 %v205
    %v298 = vunpack.c.h.b16 %v205
    %v299 = vunpack.c.l.b16 %v206
    %v300 = vunpack.c.h.b16 %v206
    %v301 = vunpack.c.l.b16 %v207
    %v302 = vunpack.c.h.b16 %v207
    %v303 = vunpack.c.l.b16 %v208
    %v304 = vunpack.c.h.b16 %v208
    %v305 = vunpack.c.l.b16 %v209
    %v306 = vunpack.c.h.b16 %v209
    %v307 = vunpack.c.l.b16 %v210
    %v308 = vunpack.c.h.b16 %v210
    %v309 = vunpack.c.l.b16 %v211
    %v310 = vunpack.c.h.b16 %v211
    %v311 = vunpack.c.l.b16 %v212
    %v312 = vunpack.c.h.b16 %v212
    %v313 = vunpack.c.l.b16 %v213
    %v314 = vunpack.c.h.b16 %v213
    %v315 = vunpack.c.l.b16 %v214
    %v316 = vunpack.c.h.b16 %v214
    %v317 = vunpack.c.l.b16 %v215
    %v318 = vunpack.c.h.b16 %v215
    %v319 = vunpack.c.l.b16 %v216
    %v320 = vunpack.c.h.b16 %v216
    %v321 = vunpack.c.l.b16 %v217
    %v322 = vunpack.c.h.b16 %v217
    %v323 = vunpack.c.l.b16 %v218
    %v324 = vunpack.c.h.b16 %v218
    %v325 = vunpack.c.l.b16 %v219
    %v326 = vunpack.c.h.b16 %v219
    %v327 = vunpack.c.l.b16 %v220
    %v328 = vunpack.c.h.b16 %v220
    %v329 = vpack.c.b16 %v267, %v265
    %v330 = vpack.c.b16 %v268, %v266
    %v331 = vpack.c.b16 %v271, %v269
    %v332 = vpack.c.b16 %v272, %v270
    %v333 = vpack.c.b16 %v275, %v273
    %v334 = vpack.c.b16 %v276, %v274
    %v335 = vpack.c.b16 %v279, %v277
    %v336 = vpack.c.b16 %v280, %v278
    %v337 = vpack.c.b16 %v283, %v281
    %v338 = vpack.c.b16 %v284, %v282
    %v339 = vpack.c.b16 %v287, %v285
    %v340 = vpack.c.b16 %v288, %v286
    %v341 = vpack.c.b16 %v291, %v289
    %v342 = vpack.c.b16 %v292, %v290
    %v343 = vpack.c.b16 %v295, %v293
    %v344 = vpack.c.b16 %v296, %v294
    %v345 = vpack.c.b16 %v299, %v297
    %v346 = vpack.c.b16 %v300, %v298
    %v347 = vpack.c.b16 %v303, %v301
    %v348 = vpack.c.b16 %v304, %v302
    %v349 = vpack.c.b16 %v307, %v305
    %v350 = vpack.c.b16 %v308, %v306
    %v351 = vpack.c.b16 %v311, %v309
    %v352 = vpack.c.b16 %v312, %v310
    %v353 = vpack.c.b16 %v315, %v313
    %v354 = vpack.c.b16 %v316, %v314
    %v355 = vpack.c.b16 %v319, %v317
    %v356 = vpack.c.b16 %v320, %v318
    %v357 = vpack.c.b16 %v323, %v321
    %v358 = vpack.c.b16 %v324, %v322
    %v359 = vpack.c.b16 %v327, %v325
    %v360 = vpack.c.b16 %v328, %v326
    %393 = vmatprep.subr.bf16.mxu0 %v344
    %394 = vmatpush1.bf16.msra.mxu0 %v343
    %395 = vmatprep.subr.bf16.mxu0 %v342
    %396 = vmatpush1.bf16.msra.mxu0 %v341
    %397 = vmatprep.subr.bf16.mxu0 %v340
    %398 = vmatpush1.bf16.msra.mxu0 %v339
    %399 = vmatprep.subr.bf16.mxu0 %v338
    %400 = vmatpush1.bf16.msra.mxu0 %v337
    %401 = vmatprep.subr.bf16.mxu0 %v336
    %402 = vmatpush1.bf16.msra.mxu0 %v335
    %403 = vmatprep.subr.bf16.mxu0 %v334
    %404 = vmatpush1.bf16.msra.mxu0 %v333
    %405 = vmatprep.subr.bf16.mxu0 %v332
    %406 = vmatpush1.bf16.msra.mxu0 %v331
    %407 = vmatprep.subr.bf16.mxu0 %v330
    %408 = vmatpush1.bf16.msra.mxu0 %v329
    %409 = vmatprep.subr.bf16.mxu0 %v360
    %410 = vmatpush2.bf16.msra.mxu0 %v359
    %411 = vmatprep.subr.bf16.mxu0 %v358
    %412 = vmatpush2.bf16.msra.mxu0 %v357
    %413 = vmatprep.subr.bf16.mxu0 %v356
    %414 = vmatpush2.bf16.msra.mxu0 %v355
    %415 = vmatprep.subr.bf16.mxu0 %v354
    %416 = vmatpush2.bf16.msra.mxu0 %v353
    %417 = vmatprep.subr.bf16.mxu0 %v352
    %418 = vmatpush2.bf16.msra.mxu0 %v351
    %419 = vmatprep.subr.bf16.mxu0 %v350
    %420 = vmatpush2.bf16.msra.mxu0 %v349
    %421 = vmatprep.subr.bf16.mxu0 %v348
    %422 = vmatpush2.bf16.msra.mxu0 %v347
    %423 = vmatprep.subr.bf16.mxu0 %v346
    %424 = vmatpush2.bf16.msra.mxu0 %v345
    %425 = vmatprep.mubr.bf16.mxu0 %v158
    %426 = vmatmul.mubr.bf16.gmra.mxu0 %v157
    %v427 = vpop.f32.mrf.mxu0
    %v428 = vadd.f32 %v226, %v427
    %v429 = vpop.f32.mrf.mxu0
    %v430 = vadd.f32 %v230, %v429
    %v431 = vpop.f32.mrf.mxu0
    %v432 = vadd.f32 %v226, %v431
    %v433 = vpop.f32.mrf.mxu0
    %v434 = vadd.f32 %v230, %v433
    %435 = vmatprep.mubr.bf16.mxu0 %v160
    %436 = vmatmul.mubr.bf16.gmra.mxu0 %v159
    %v437 = vpop.f32.mrf.mxu0
    %v438 = vadd.f32 %v226, %v437
    %v439 = vpop.f32.mrf.mxu0
    %v440 = vadd.f32 %v230, %v439
    %v441 = vpop.f32.mrf.mxu0
    %v442 = vadd.f32 %v226, %v441
    %v443 = vpop.f32.mrf.mxu0
    %v444 = vadd.f32 %v230, %v443
    %445 = vmatprep.mubr.bf16.mxu0 %v162
    %446 = vmatmul.mubr.bf16.gmra.mxu0 %v161
    %v447 = vpop.f32.mrf.mxu0
    %v448 = vadd.f32 %v226, %v447
    %v449 = vpop.f32.mrf.mxu0
    %v450 = vadd.f32 %v230, %v449
    %v451 = vpop.f32.mrf.mxu0
    %v452 = vadd.f32 %v226, %v451
    %v453 = vpop.f32.mrf.mxu0
    %v454 = vadd.f32 %v230, %v453
    %455 = vmatprep.mubr.bf16.mxu0 %v164
    %456 = vmatmul.mubr.bf16.gmra.mxu0 %v163
    %v457 = vpop.f32.mrf.mxu0
    %v458 = vadd.f32 %v226, %v457
    %v459 = vpop.f32.mrf.mxu0
    %v460 = vadd.f32 %v230, %v459
    %v461 = vpop.f32.mrf.mxu0
    %v462 = vadd.f32 %v226, %v461
    %v463 = vpop.f32.mrf.mxu0
    %v464 = vadd.f32 %v230, %v463
    %465 = vmatprep.mubr.bf16.mxu0 %v166
    %466 = vmatmul.mubr.bf16.gmra.mxu0 %v165
    %v467 = vpop.f32.mrf.mxu0
    %v468 = vadd.f32 %v226, %v467
    %v469 = vpop.f32.mrf.mxu0
    %v470 = vadd.f32 %v230, %v469
    %v471 = vpop.f32.mrf.mxu0
    %v472 = vadd.f32 %v226, %v471
    %v473 = vpop.f32.mrf.mxu0
    %v474 = vadd.f32 %v230, %v473
    %475 = vmatprep.mubr.bf16.mxu0 %v168
    %476 = vmatmul.mubr.bf16.gmra.mxu0 %v167
    %v477 = vpop.f32.mrf.mxu0
    %v478 = vadd.f32 %v226, %v477
    %v479 = vpop.f32.mrf.mxu0
    %v480 = vadd.f32 %v230, %v479
    %v481 = vpop.f32.mrf.mxu0
    %v482 = vadd.f32 %v226, %v481
    %v483 = vpop.f32.mrf.mxu0
    %v484 = vadd.f32 %v230, %v483
    %485 = vmatprep.mubr.bf16.mxu0 %v170
    %486 = vmatmul.mubr.bf16.gmra.mxu0 %v169
    %v487 = vpop.f32.mrf.mxu0
    %v488 = vadd.f32 %v226, %v487
    %v489 = vpop.f32.mrf.mxu0
    %v490 = vadd.f32 %v230, %v489
    %v491 = vpop.f32.mrf.mxu0
    %v492 = vadd.f32 %v226, %v491
    %v493 = vpop.f32.mrf.mxu0
    %v494 = vadd.f32 %v230, %v493
    %495 = vmatprep.mubr.bf16.mxu0 %v172
    %496 = vmatmul.mubr.bf16.gmra.mxu0 %v171
    %v497 = vpop.f32.mrf.mxu0
    %v498 = vadd.f32 %v226, %v497
    %v499 = vpop.f32.mrf.mxu0
    %v500 = vadd.f32 %v230, %v499
    %v501 = vpop.f32.mrf.mxu0
    %v502 = vadd.f32 %v226, %v501
    %v503 = vpop.f32.mrf.mxu0
    %v504 = vadd.f32 %v230, %v503
    %505 = vmatprep.mubr.bf16.mxu0 %v174
    %506 = vmatmul.mubr.bf16.gmra.mxu0 %v173
    %v507 = vpop.f32.mrf.mxu0
    %v508 = vadd.f32 %v226, %v507
    %v509 = vpop.f32.mrf.mxu0
    %v510 = vadd.f32 %v230, %v509
    %v511 = vpop.f32.mrf.mxu0
    %v512 = vadd.f32 %v226, %v511
    %v513 = vpop.f32.mrf.mxu0
    %v514 = vadd.f32 %v230, %v513
    %515 = vmatprep.mubr.bf16.mxu0 %v176
    %516 = vmatmul.mubr.bf16.gmra.mxu0 %v175
    %v517 = vpop.f32.mrf.mxu0
    %v518 = vadd.f32 %v226, %v517
    %v519 = vpop.f32.mrf.mxu0
    %v520 = vadd.f32 %v230, %v519
    %v521 = vpop.f32.mrf.mxu0
    %v522 = vadd.f32 %v226, %v521
    %v523 = vpop.f32.mrf.mxu0
    %v524 = vadd.f32 %v230, %v523
    %525 = vmatprep.mubr.bf16.mxu0 %v178
    %526 = vmatmul.mubr.bf16.gmra.mxu0 %v177
    %v527 = vpop.f32.mrf.mxu0
    %v528 = vadd.f32 %v226, %v527
    %v529 = vpop.f32.mrf.mxu0
    %v530 = vadd.f32 %v230, %v529
    %v531 = vpop.f32.mrf.mxu0
    %v532 = vadd.f32 %v226, %v531
    %v533 = vpop.f32.mrf.mxu0
    %v534 = vadd.f32 %v230, %v533
    %535 = vmatprep.mubr.bf16.mxu0 %v180
    %536 = vmatmul.mubr.bf16.gmra.mxu0 %v179
    %v537 = vpop.f32.mrf.mxu0
    %v538 = vadd.f32 %v226, %v537
    %v539 = vpop.f32.mrf.mxu0
    %v540 = vadd.f32 %v230, %v539
    %v541 = vpop.f32.mrf.mxu0
    %v542 = vadd.f32 %v226, %v541
    %v543 = vpop.f32.mrf.mxu0
    %v544 = vadd.f32 %v230, %v543
    %545 = vmatprep.mubr.bf16.mxu0 %v182
    %546 = vmatmul.mubr.bf16.gmra.mxu0 %v181
    %v547 = vpop.f32.mrf.mxu0
    %v548 = vadd.f32 %v226, %v547
    %v549 = vpop.f32.mrf.mxu0
    %v550 = vadd.f32 %v230, %v549
    %v551 = vpop.f32.mrf.mxu0
    %v552 = vadd.f32 %v226, %v551
    %v553 = vpop.f32.mrf.mxu0
    %v554 = vadd.f32 %v230, %v553
    %555 = vmatprep.mubr.bf16.mxu0 %v184
    %556 = vmatmul.mubr.bf16.gmra.mxu0 %v183
    %v557 = vpop.f32.mrf.mxu0
    %v558 = vadd.f32 %v226, %v557
    %v559 = vpop.f32.mrf.mxu0
    %v560 = vadd.f32 %v230, %v559
    %v561 = vpop.f32.mrf.mxu0
    %v562 = vadd.f32 %v226, %v561
    %v563 = vpop.f32.mrf.mxu0
    %v564 = vadd.f32 %v230, %v563
    %565 = vmatprep.mubr.bf16.mxu0 %v186
    %566 = vmatmul.mubr.bf16.gmra.mxu0 %v185
    %v567 = vpop.f32.mrf.mxu0
    %v568 = vadd.f32 %v226, %v567
    %v569 = vpop.f32.mrf.mxu0
    %v570 = vadd.f32 %v230, %v569
    %v571 = vpop.f32.mrf.mxu0
    %v572 = vadd.f32 %v226, %v571
    %v573 = vpop.f32.mrf.mxu0
    %v574 = vadd.f32 %v230, %v573
    %575 = vmatprep.mubr.bf16.mxu0 %v188
    %576 = vmatmul.mubr.bf16.gmra.mxu0 %v187
    %v577 = vpop.f32.mrf.mxu0
    %v578 = vadd.f32 %v226, %v577
    %v579 = vpop.f32.mrf.mxu0
    %v580 = vadd.f32 %v230, %v579
    %v581 = vpop.f32.mrf.mxu0
    %v582 = vadd.f32 %v226, %v581
    %v583 = vpop.f32.mrf.mxu0
    %v584 = vadd.f32 %v230, %v583
    %585 = vdwg.mxu0
    %v586 = vmax.f32 %v428, 0.0
    %v587 = vmax.f32 %v430, 0.0
    %v588 = vmax.f32 %v432, 0.0
    %v589 = vmax.f32 %v434, 0.0
    %v590 = vmax.f32 %v438, 0.0
    %v591 = vmax.f32 %v440, 0.0
    %v592 = vmax.f32 %v442, 0.0
    %v593 = vmax.f32 %v444, 0.0
    %v594 = vmax.f32 %v448, 0.0
    %v595 = vmax.f32 %v450, 0.0
    %v596 = vmax.f32 %v452, 0.0
    %v597 = vmax.f32 %v454, 0.0
    %v598 = vmax.f32 %v458, 0.0
    %v599 = vmax.f32 %v460, 0.0
    %v600 = vmax.f32 %v462, 0.0
    %v601 = vmax.f32 %v464, 0.0
    %v602 = vmax.f32 %v468, 0.0
    %v603 = vmax.f32 %v470, 0.0
    %v604 = vmax.f32 %v472, 0.0
    %v605 = vmax.f32 %v474, 0.0
    %v606 = vmax.f32 %v478, 0.0
    %v607 = vmax.f32 %v480, 0.0
    %v608 = vmax.f32 %v482, 0.0
    %v609 = vmax.f32 %v484, 0.0
    %v610 = vmax.f32 %v488, 0.0
    %v611 = vmax.f32 %v490, 0.0
    %v612 = vmax.f32 %v492, 0.0
    %v613 = vmax.f32 %v494, 0.0
    %v614 = vmax.f32 %v498, 0.0
    %v615 = vmax.f32 %v500, 0.0
    %v616 = vmax.f32 %v502, 0.0
    %v617 = vmax.f32 %v504, 0.0
    %v618 = vmax.f32 %v508, 0.0
    %v619 = vmax.f32 %v510, 0.0
    %v620 = vmax.f32 %v512, 0.0
    %v621 = vmax.f32 %v514, 0.0
    %v622 = vmax.f32 %v518, 0.0
    %v623 = vmax.f32 %v520, 0.0
    %v624 = vmax.f32 %v522, 0.0
    %v625 = vmax.f32 %v524, 0.0
    %v626 = vmax.f32 %v528, 0.0
    %v627 = vmax.f32 %v530, 0.0
    %v628 = vmax.f32 %v532, 0.0
    %v629 = vmax.f32 %v534, 0.0
    %v630 = vmax.f32 %v538, 0.0
    %v631 = vmax.f32 %v540, 0.0
    %v632 = vmax.f32 %v542, 0.0
    %v633 = vmax.f32 %v544, 0.0
    %v634 = vmax.f32 %v548, 0.0
    %v635 = vmax.f32 %v550, 0.0
    %v636 = vmax.f32 %v552, 0.0
    %v637 = vmax.f32 %v554, 0.0
    %v638 = vmax.f32 %v558, 0.0
    %v639 = vmax.f32 %v560, 0.0
    %v640 = vmax.f32 %v562, 0.0
    %v641 = vmax.f32 %v564, 0.0
    %v642 = vmax.f32 %v568, 0.0
    %v643 = vmax.f32 %v570, 0.0
    %v644 = vmax.f32 %v572, 0.0
    %v645 = vmax.f32 %v574, 0.0
    %v646 = vmax.f32 %v578, 0.0
    %v647 = vmax.f32 %v580, 0.0
    %v648 = vmax.f32 %v582, 0.0
    %v649 = vmax.f32 %v584, 0.0
    %v650 = vpack.c.bf16 %v588, %v586
    %v651 = vpack.c.bf16 %v589, %v587
    %v652 = vpack.c.bf16 %v592, %v590
    %v653 = vpack.c.bf16 %v593, %v591
    %v654 = vpack.c.bf16 %v596, %v594
    %v655 = vpack.c.bf16 %v597, %v595
    %v656 = vpack.c.bf16 %v600, %v598
    %v657 = vpack.c.bf16 %v601, %v599
    %v658 = vpack.c.bf16 %v604, %v602
    %v659 = vpack.c.bf16 %v605, %v603
    %v660 = vpack.c.bf16 %v608, %v606
    %v661 = vpack.c.bf16 %v609, %v607
    %v662 = vpack.c.bf16 %v612, %v610
    %v663 = vpack.c.bf16 %v613, %v611
    %v664 = vpack.c.bf16 %v616, %v614
    %v665 = vpack.c.bf16 %v617, %v615
    %v666 = vpack.c.bf16 %v620, %v618
    %v667 = vpack.c.bf16 %v621, %v619
    %v668 = vpack.c.bf16 %v624, %v622
    %v669 = vpack.c.bf16 %v625, %v623
    %v670 = vpack.c.bf16 %v628, %v626
    %v671 = vpack.c.bf16 %v629, %v627
    %v672 = vpack.c.bf16 %v632, %v630
    %v673 = vpack.c.bf16 %v633, %v631
    %v674 = vpack.c.bf16 %v636, %v634
    %v675 = vpack.c.bf16 %v637, %v635
    %v676 = vpack.c.bf16 %v640, %v638
    %v677 = vpack.c.bf16 %v641, %v639
    %v678 = vpack.c.bf16 %v644, %v642
    %v679 = vpack.c.bf16 %v645, %v643
    %v680 = vpack.c.bf16 %v648, %v646
    %v681 = vpack.c.bf16 %v649, %v647
    %v682 = vld [vmem:[#allocation7] sm:$0xff]
    %v683 = vld [vmem:[#allocation7 + $0x8] sm:$0xff]
    %v684 = vld [vmem:[#allocation7 + $0x10] sm:$0xff]
    %v685 = vld [vmem:[#allocation7 + $0x18] sm:$0xff]
    %v686 = vld [vmem:[#allocation7 + $0x20] sm:$0xff]
    %v687 = vld [vmem:[#allocation7 + $0x28] sm:$0xff]
    %v688 = vld [vmem:[#allocation7 + $0x30] sm:$0xff]
    %v689 = vld [vmem:[#allocation7 + $0x38] sm:$0xff]
    %v690 = vld [vmem:[#allocation7 + $0x40] sm:$0xff]
    %v691 = vld [vmem:[#allocation7 + $0x48] sm:$0xff]
    %v692 = vld [vmem:[#allocation7 + $0x50] sm:$0xff]
    %v693 = vld [vmem:[#allocation7 + $0x58] sm:$0xff]
    %v694 = vld [vmem:[#allocation7 + $0x60] sm:$0xff]
    %v695 = vld [vmem:[#allocation7 + $0x68] sm:$0xff]
    %v696 = vld [vmem:[#allocation7 + $0x70] sm:$0xff]
    %v697 = vld [vmem:[#allocation7 + $0x78] sm:$0xff]
    %v698 = vld [vmem:[#allocation7 + $0x80] sm:$0xff]
    %v699 = vld [vmem:[#allocation7 + $0x88] sm:$0xff]
    %v700 = vld [vmem:[#allocation7 + $0x90] sm:$0xff]
    %v701 = vld [vmem:[#allocation7 + $0x98] sm:$0xff]
    %v702 = vld [vmem:[#allocation7 + $0xa0] sm:$0xff]
    %v703 = vld [vmem:[#allocation7 + $0xa8] sm:$0xff]
    %v704 = vld [vmem:[#allocation7 + $0xb0] sm:$0xff]
    %v705 = vld [vmem:[#allocation7 + $0xb8] sm:$0xff]
    %v706 = vld [vmem:[#allocation7 + $0xc0] sm:$0xff]
    %v707 = vld [vmem:[#allocation7 + $0xc8] sm:$0xff]
    %v708 = vld [vmem:[#allocation7 + $0xd0] sm:$0xff]
    %v709 = vld [vmem:[#allocation7 + $0xd8] sm:$0xff]
    %v710 = vld [vmem:[#allocation7 + $0xe0] sm:$0xff]
    %v711 = vld [vmem:[#allocation7 + $0xe8] sm:$0xff]
    %v712 = vld [vmem:[#allocation7 + $0xf0] sm:$0xff]
    %v713 = vld [vmem:[#allocation7 + $0xf8] sm:$0xff]
    %v714 = vld [vmem:[%s4] sm:$0x3]
    %v716 = vlaneseq
    %v717 = vshrl.u32 %v716, 7
    %v718 = vsub.s32 0, %v717
    %v719 = vrot.slane %v714, %v718
    %v720 = vlaneseq
    %v721 = vshrl.u32 %v720, 7
    %v722 = vsub.s32 1, %v721
    %v723 = vrot.slane %v714, %v722
    %v758 = vunpack.c.l.b16 %v682
    %v759 = vunpack.c.h.b16 %v682
    %v760 = vunpack.c.l.b16 %v683
    %v761 = vunpack.c.h.b16 %v683
    %v762 = vunpack.c.l.b16 %v684
    %v763 = vunpack.c.h.b16 %v684
    %v764 = vunpack.c.l.b16 %v685
    %v765 = vunpack.c.h.b16 %v685
    %v766 = vunpack.c.l.b16 %v686
    %v767 = vunpack.c.h.b16 %v686
    %v768 = vunpack.c.l.b16 %v687
    %v769 = vunpack.c.h.b16 %v687
    %v770 = vunpack.c.l.b16 %v688
    %v771 = vunpack.c.h.b16 %v688
    %v772 = vunpack.c.l.b16 %v689
    %v773 = vunpack.c.h.b16 %v689
    %v774 = vunpack.c.l.b16 %v690
    %v775 = vunpack.c.h.b16 %v690
    %v776 = vunpack.c.l.b16 %v691
    %v777 = vunpack.c.h.b16 %v691
    %v778 = vunpack.c.l.b16 %v692
    %v779 = vunpack.c.h.b16 %v692
    %v780 = vunpack.c.l.b16 %v693
    %v781 = vunpack.c.h.b16 %v693
    %v782 = vunpack.c.l.b16 %v694
    %v783 = vunpack.c.h.b16 %v694
    %v784 = vunpack.c.l.b16 %v695
    %v785 = vunpack.c.h.b16 %v695
    %v786 = vunpack.c.l.b16 %v696
    %v787 = vunpack.c.h.b16 %v696
    %v788 = vunpack.c.l.b16 %v697
    %v789 = vunpack.c.h.b16 %v697
    %v790 = vunpack.c.l.b16 %v698
    %v791 = vunpack.c.h.b16 %v698
    %v792 = vunpack.c.l.b16 %v699
    %v793 = vunpack.c.h.b16 %v699
    %v794 = vunpack.c.l.b16 %v700
    %v795 = vunpack.c.h.b16 %v700
    %v796 = vunpack.c.l.b16 %v701
    %v797 = vunpack.c.h.b16 %v701
    %v798 = vunpack.c.l.b16 %v702
    %v799 = vunpack.c.h.b16 %v702
    %v800 = vunpack.c.l.b16 %v703
    %v801 = vunpack.c.h.b16 %v703
    %v802 = vunpack.c.l.b16 %v704
    %v803 = vunpack.c.h.b16 %v704
    %v804 = vunpack.c.l.b16 %v705
    %v805 = vunpack.c.h.b16 %v705
    %v806 = vunpack.c.l.b16 %v706
    %v807 = vunpack.c.h.b16 %v706
    %v808 = vunpack.c.l.b16 %v707
    %v809 = vunpack.c.h.b16 %v707
    %v810 = vunpack.c.l.b16 %v708
    %v811 = vunpack.c.h.b16 %v708
    %v812 = vunpack.c.l.b16 %v709
    %v813 = vunpack.c.h.b16 %v709
    %v814 = vunpack.c.l.b16 %v710
    %v815 = vunpack.c.h.b16 %v710
    %v816 = vunpack.c.l.b16 %v711
    %v817 = vunpack.c.h.b16 %v711
    %v818 = vunpack.c.l.b16 %v712
    %v819 = vunpack.c.h.b16 %v712
    %v820 = vunpack.c.l.b16 %v713
    %v821 = vunpack.c.h.b16 %v713
    %v822 = vpack.c.b16 %v760, %v758
    %v823 = vpack.c.b16 %v761, %v759
    %v824 = vpack.c.b16 %v764, %v762
    %v825 = vpack.c.b16 %v765, %v763
    %v826 = vpack.c.b16 %v768, %v766
    %v827 = vpack.c.b16 %v769, %v767
    %v828 = vpack.c.b16 %v772, %v770
    %v829 = vpack.c.b16 %v773, %v771
    %v830 = vpack.c.b16 %v776, %v774
    %v831 = vpack.c.b16 %v777, %v775
    %v832 = vpack.c.b16 %v780, %v778
    %v833 = vpack.c.b16 %v781, %v779
    %v834 = vpack.c.b16 %v784, %v782
    %v835 = vpack.c.b16 %v785, %v783
    %v836 = vpack.c.b16 %v788, %v786
    %v837 = vpack.c.b16 %v789, %v787
    %v838 = vpack.c.b16 %v792, %v790
    %v839 = vpack.c.b16 %v793, %v791
    %v840 = vpack.c.b16 %v796, %v794
    %v841 = vpack.c.b16 %v797, %v795
    %v842 = vpack.c.b16 %v800, %v798
    %v843 = vpack.c.b16 %v801, %v799
    %v844 = vpack.c.b16 %v804, %v802
    %v845 = vpack.c.b16 %v805, %v803
    %v846 = vpack.c.b16 %v808, %v806
    %v847 = vpack.c.b16 %v809, %v807
    %v848 = vpack.c.b16 %v812, %v810
    %v849 = vpack.c.b16 %v813, %v811
    %v850 = vpack.c.b16 %v816, %v814
    %v851 = vpack.c.b16 %v817, %v815
    %v852 = vpack.c.b16 %v820, %v818
    %v853 = vpack.c.b16 %v821, %v819
    %886 = vmatprep.subr.bf16.mxu0 %v837
    %887 = vmatpush1.bf16.msra.mxu0 %v836
    %888 = vmatprep.subr.bf16.mxu0 %v835
    %889 = vmatpush1.bf16.msra.mxu0 %v834
    %890 = vmatprep.subr.bf16.mxu0 %v833
    %891 = vmatpush1.bf16.msra.mxu0 %v832
    %892 = vmatprep.subr.bf16.mxu0 %v831
    %893 = vmatpush1.bf16.msra.mxu0 %v830
    %894 = vmatprep.subr.bf16.mxu0 %v829
    %895 = vmatpush1.bf16.msra.mxu0 %v828
    %896 = vmatprep.subr.bf16.mxu0 %v827
    %897 = vmatpush1.bf16.msra.mxu0 %v826
    %898 = vmatprep.subr.bf16.mxu0 %v825
    %899 = vmatpush1.bf16.msra.mxu0 %v824
    %900 = vmatprep.subr.bf16.mxu0 %v823
    %901 = vmatpush1.bf16.msra.mxu0 %v822
    %902 = vmatprep.subr.bf16.mxu0 %v853
    %903 = vmatpush2.bf16.msra.mxu0 %v852
    %904 = vmatprep.subr.bf16.mxu0 %v851
    %905 = vmatpush2.bf16.msra.mxu0 %v850
    %906 = vmatprep.subr.bf16.mxu0 %v849
    %907 = vmatpush2.bf16.msra.mxu0 %v848
    %908 = vmatprep.subr.bf16.mxu0 %v847
    %909 = vmatpush2.bf16.msra.mxu0 %v846
    %910 = vmatprep.subr.bf16.mxu0 %v845
    %911 = vmatpush2.bf16.msra.mxu0 %v844
    %912 = vmatprep.subr.bf16.mxu0 %v843
    %913 = vmatpush2.bf16.msra.mxu0 %v842
    %914 = vmatprep.subr.bf16.mxu0 %v841
    %915 = vmatpush2.bf16.msra.mxu0 %v840
    %916 = vmatprep.subr.bf16.mxu0 %v839
    %917 = vmatpush2.bf16.msra.mxu0 %v838
    %918 = vmatprep.mubr.bf16.mxu0 %v651
    %919 = vmatmul.mubr.bf16.gmra.mxu0 %v650
    %v920 = vpop.f32.mrf.mxu0
    %v921 = vadd.f32 %v719, %v920
    %v922 = vpop.f32.mrf.mxu0
    %v923 = vadd.f32 %v723, %v922
    %v924 = vpop.f32.mrf.mxu0
    %v925 = vadd.f32 %v719, %v924
    %v926 = vpop.f32.mrf.mxu0
    %v927 = vadd.f32 %v723, %v926
    %928 = vmatprep.mubr.bf16.mxu0 %v653
    %929 = vmatmul.mubr.bf16.gmra.mxu0 %v652
    %v930 = vpop.f32.mrf.mxu0
    %v931 = vadd.f32 %v719, %v930
    %v932 = vpop.f32.mrf.mxu0
    %v933 = vadd.f32 %v723, %v932
    %v934 = vpop.f32.mrf.mxu0
    %v935 = vadd.f32 %v719, %v934
    %v936 = vpop.f32.mrf.mxu0
    %v937 = vadd.f32 %v723, %v936
    %938 = vmatprep.mubr.bf16.mxu0 %v655
    %939 = vmatmul.mubr.bf16.gmra.mxu0 %v654
    %v940 = vpop.f32.mrf.mxu0
    %v941 = vadd.f32 %v719, %v940
    %v942 = vpop.f32.mrf.mxu0
    %v943 = vadd.f32 %v723, %v942
    %v944 = vpop.f32.mrf.mxu0
    %v945 = vadd.f32 %v719, %v944
    %v946 = vpop.f32.mrf.mxu0
    %v947 = vadd.f32 %v723, %v946
    %948 = vmatprep.mubr.bf16.mxu0 %v657
    %949 = vmatmul.mubr.bf16.gmra.mxu0 %v656
    %v950 = vpop.f32.mrf.mxu0
    %v951 = vadd.f32 %v719, %v950
    %v952 = vpop.f32.mrf.mxu0
    %v953 = vadd.f32 %v723, %v952
    %v954 = vpop.f32.mrf.mxu0
    %v955 = vadd.f32 %v719, %v954
    %v956 = vpop.f32.mrf.mxu0
    %v957 = vadd.f32 %v723, %v956
    %958 = vmatprep.mubr.bf16.mxu0 %v659
    %959 = vmatmul.mubr.bf16.gmra.mxu0 %v658
    %v960 = vpop.f32.mrf.mxu0
    %v961 = vadd.f32 %v719, %v960
    %v962 = vpop.f32.mrf.mxu0
    %v963 = vadd.f32 %v723, %v962
    %v964 = vpop.f32.mrf.mxu0
    %v965 = vadd.f32 %v719, %v964
    %v966 = vpop.f32.mrf.mxu0
    %v967 = vadd.f32 %v723, %v966
    %968 = vmatprep.mubr.bf16.mxu0 %v661
    %969 = vmatmul.mubr.bf16.gmra.mxu0 %v660
    %v970 = vpop.f32.mrf.mxu0
    %v971 = vadd.f32 %v719, %v970
    %v972 = vpop.f32.mrf.mxu0
    %v973 = vadd.f32 %v723, %v972
    %v974 = vpop.f32.mrf.mxu0
    %v975 = vadd.f32 %v719, %v974
    %v976 = vpop.f32.mrf.mxu0
    %v977 = vadd.f32 %v723, %v976
    %978 = vmatprep.mubr.bf16.mxu0 %v663
    %979 = vmatmul.mubr.bf16.gmra.mxu0 %v662
    %v980 = vpop.f32.mrf.mxu0
    %v981 = vadd.f32 %v719, %v980
    %v982 = vpop.f32.mrf.mxu0
    %v983 = vadd.f32 %v723, %v982
    %v984 = vpop.f32.mrf.mxu0
    %v985 = vadd.f32 %v719, %v984
    %v986 = vpop.f32.mrf.mxu0
    %v987 = vadd.f32 %v723, %v986
    %988 = vmatprep.mubr.bf16.mxu0 %v665
    %989 = vmatmul.mubr.bf16.gmra.mxu0 %v664
    %v990 = vpop.f32.mrf.mxu0
    %v991 = vadd.f32 %v719, %v990
    %v992 = vpop.f32.mrf.mxu0
    %v993 = vadd.f32 %v723, %v992
    %v994 = vpop.f32.mrf.mxu0
    %v995 = vadd.f32 %v719, %v994
    %v996 = vpop.f32.mrf.mxu0
    %v997 = vadd.f32 %v723, %v996
    %998 = vmatprep.mubr.bf16.mxu0 %v667
    %999 = vmatmul.mubr.bf16.gmra.mxu0 %v666
    %v1000 = vpop.f32.mrf.mxu0
    %v1001 = vadd.f32 %v719, %v1000
    %v1002 = vpop.f32.mrf.mxu0
    %v1003 = vadd.f32 %v723, %v1002
    %v1004 = vpop.f32.mrf.mxu0
    %v1005 = vadd.f32 %v719, %v1004
    %v1006 = vpop.f32.mrf.mxu0
    %v1007 = vadd.f32 %v723, %v1006
    %1008 = vmatprep.mubr.bf16.mxu0 %v669
    %1009 = vmatmul.mubr.bf16.gmra.mxu0 %v668
    %v1010 = vpop.f32.mrf.mxu0
    %v1011 = vadd.f32 %v719, %v1010
    %v1012 = vpop.f32.mrf.mxu0
    %v1013 = vadd.f32 %v723, %v1012
    %v1014 = vpop.f32.mrf.mxu0
    %v1015 = vadd.f32 %v719, %v1014
    %v1016 = vpop.f32.mrf.mxu0
    %v1017 = vadd.f32 %v723, %v1016
    %1018 = vmatprep.mubr.bf16.mxu0 %v671
    %1019 = vmatmul.mubr.bf16.gmra.mxu0 %v670
    %v1020 = vpop.f32.mrf.mxu0
    %v1021 = vadd.f32 %v719, %v1020
    %v1022 = vpop.f32.mrf.mxu0
    %v1023 = vadd.f32 %v723, %v1022
    %v1024 = vpop.f32.mrf.mxu0
    %v1025 = vadd.f32 %v719, %v1024
    %v1026 = vpop.f32.mrf.mxu0
    %v1027 = vadd.f32 %v723, %v1026
    %1028 = vmatprep.mubr.bf16.mxu0 %v673
    %1029 = vmatmul.mubr.bf16.gmra.mxu0 %v672
    %v1030 = vpop.f32.mrf.mxu0
    %v1031 = vadd.f32 %v719, %v1030
    %v1032 = vpop.f32.mrf.mxu0
    %v1033 = vadd.f32 %v723, %v1032
    %v1034 = vpop.f32.mrf.mxu0
    %v1035 = vadd.f32 %v719, %v1034
    %v1036 = vpop.f32.mrf.mxu0
    %v1037 = vadd.f32 %v723, %v1036
    %1038 = vmatprep.mubr.bf16.mxu0 %v675
    %1039 = vmatmul.mubr.bf16.gmra.mxu0 %v674
    %v1040 = vpop.f32.mrf.mxu0
    %v1041 = vadd.f32 %v719, %v1040
    %v1042 = vpop.f32.mrf.mxu0
    %v1043 = vadd.f32 %v723, %v1042
    %v1044 = vpop.f32.mrf.mxu0
    %v1045 = vadd.f32 %v719, %v1044
    %v1046 = vpop.f32.mrf.mxu0
    %v1047 = vadd.f32 %v723, %v1046
    %1048 = vmatprep.mubr.bf16.mxu0 %v677
    %1049 = vmatmul.mubr.bf16.gmra.mxu0 %v676
    %v1050 = vpop.f32.mrf.mxu0
    %v1051 = vadd.f32 %v719, %v1050
    %v1052 = vpop.f32.mrf.mxu0
    %v1053 = vadd.f32 %v723, %v1052
    %v1054 = vpop.f32.mrf.mxu0
    %v1055 = vadd.f32 %v719, %v1054
    %v1056 = vpop.f32.mrf.mxu0
    %v1057 = vadd.f32 %v723, %v1056
    %1058 = vmatprep.mubr.bf16.mxu0 %v679
    %1059 = vmatmul.mubr.bf16.gmra.mxu0 %v678
    %v1060 = vpop.f32.mrf.mxu0
    %v1061 = vadd.f32 %v719, %v1060
    %v1062 = vpop.f32.mrf.mxu0
    %v1063 = vadd.f32 %v723, %v1062
    %v1064 = vpop.f32.mrf.mxu0
    %v1065 = vadd.f32 %v719, %v1064
    %v1066 = vpop.f32.mrf.mxu0
    %v1067 = vadd.f32 %v723, %v1066
    %1068 = vmatprep.mubr.bf16.mxu0 %v681
    %1069 = vmatmul.mubr.bf16.gmra.mxu0 %v680
    %v1070 = vpop.f32.mrf.mxu0
    %v1071 = vadd.f32 %v719, %v1070
    %v1072 = vpop.f32.mrf.mxu0
    %v1073 = vadd.f32 %v723, %v1072
    %v1074 = vpop.f32.mrf.mxu0
    %v1075 = vadd.f32 %v719, %v1074
    %v1076 = vpop.f32.mrf.mxu0
    %v1077 = vadd.f32 %v723, %v1076
    %1078 = vdwg.mxu0
    %v1079 = vmax.f32 %v921, 0.0
    %v1080 = vmax.f32 %v923, 0.0
    %v1081 = vmax.f32 %v925, 0.0
    %v1082 = vmax.f32 %v927, 0.0
    %v1083 = vmax.f32 %v931, 0.0
    %v1084 = vmax.f32 %v933, 0.0
    %v1085 = vmax.f32 %v935, 0.0
    %v1086 = vmax.f32 %v937, 0.0
    %v1087 = vmax.f32 %v941, 0.0
    %v1088 = vmax.f32 %v943, 0.0
    %v1089 = vmax.f32 %v945, 0.0
    %v1090 = vmax.f32 %v947, 0.0
    %v1091 = vmax.f32 %v951, 0.0
    %v1092 = vmax.f32 %v953, 0.0
    %v1093 = vmax.f32 %v955, 0.0
    %v1094 = vmax.f32 %v957, 0.0
    %v1095 = vmax.f32 %v961, 0.0
    %v1096 = vmax.f32 %v963, 0.0
    %v1097 = vmax.f32 %v965, 0.0
    %v1098 = vmax.f32 %v967, 0.0
    %v1099 = vmax.f32 %v971, 0.0
    %v1100 = vmax.f32 %v973, 0.0
    %v1101 = vmax.f32 %v975, 0.0
    %v1102 = vmax.f32 %v977, 0.0
    %v1103 = vmax.f32 %v981, 0.0
    %v1104 = vmax.f32 %v983, 0.0
    %v1105 = vmax.f32 %v985, 0.0
    %v1106 = vmax.f32 %v987, 0.0
    %v1107 = vmax.f32 %v991, 0.0
    %v1108 = vmax.f32 %v993, 0.0
    %v1109 = vmax.f32 %v995, 0.0
    %v1110 = vmax.f32 %v997, 0.0
    %v1111 = vmax.f32 %v1001, 0.0
    %v1112 = vmax.f32 %v1003, 0.0
    %v1113 = vmax.f32 %v1005, 0.0
    %v1114 = vmax.f32 %v1007, 0.0
    %v1115 = vmax.f32 %v1011, 0.0
    %v1116 = vmax.f32 %v1013, 0.0
    %v1117 = vmax.f32 %v1015, 0.0
    %v1118 = vmax.f32 %v1017, 0.0
    %v1119 = vmax.f32 %v1021, 0.0
    %v1120 = vmax.f32 %v1023, 0.0
    %v1121 = vmax.f32 %v1025, 0.0
    %v1122 = vmax.f32 %v1027, 0.0
    %v1123 = vmax.f32 %v1031, 0.0
    %v1124 = vmax.f32 %v1033, 0.0
    %v1125 = vmax.f32 %v1035, 0.0
    %v1126 = vmax.f32 %v1037, 0.0
    %v1127 = vmax.f32 %v1041, 0.0
    %v1128 = vmax.f32 %v1043, 0.0
    %v1129 = vmax.f32 %v1045, 0.0
    %v1130 = vmax.f32 %v1047, 0.0
    %v1131 = vmax.f32 %v1051, 0.0
    %v1132 = vmax.f32 %v1053, 0.0
    %v1133 = vmax.f32 %v1055, 0.0
    %v1134 = vmax.f32 %v1057, 0.0
    %v1135 = vmax.f32 %v1061, 0.0
    %v1136 = vmax.f32 %v1063, 0.0
    %v1137 = vmax.f32 %v1065, 0.0
    %v1138 = vmax.f32 %v1067, 0.0
    %v1139 = vmax.f32 %v1071, 0.0
    %v1140 = vmax.f32 %v1073, 0.0
    %v1141 = vmax.f32 %v1075, 0.0
    %v1142 = vmax.f32 %v1077, 0.0
    %v1143 = vpack.c.bf16 %v1081, %v1079
    %v1144 = vpack.c.bf16 %v1082, %v1080
    %v1145 = vpack.c.bf16 %v1085, %v1083
    %v1146 = vpack.c.bf16 %v1086, %v1084
    %v1147 = vpack.c.bf16 %v1089, %v1087
    %v1148 = vpack.c.bf16 %v1090, %v1088
    %v1149 = vpack.c.bf16 %v1093, %v1091
    %v1150 = vpack.c.bf16 %v1094, %v1092
    %v1151 = vpack.c.bf16 %v1097, %v1095
    %v1152 = vpack.c.bf16 %v1098, %v1096
    %v1153 = vpack.c.bf16 %v1101, %v1099
    %v1154 = vpack.c.bf16 %v1102, %v1100
    %v1155 = vpack.c.bf16 %v1105, %v1103
    %v1156 = vpack.c.bf16 %v1106, %v1104
    %v1157 = vpack.c.bf16 %v1109, %v1107
    %v1158 = vpack.c.bf16 %v1110, %v1108
    %v1159 = vpack.c.bf16 %v1113, %v1111
    %v1160 = vpack.c.bf16 %v1114, %v1112
    %v1161 = vpack.c.bf16 %v1117, %v1115
    %v1162 = vpack.c.bf16 %v1118, %v1116
    %v1163 = vpack.c.bf16 %v1121, %v1119
    %v1164 = vpack.c.bf16 %v1122, %v1120
    %v1165 = vpack.c.bf16 %v1125, %v1123
    %v1166 = vpack.c.bf16 %v1126, %v1124
    %v1167 = vpack.c.bf16 %v1129, %v1127
    %v1168 = vpack.c.bf16 %v1130, %v1128
    %v1169 = vpack.c.bf16 %v1133, %v1131
    %v1170 = vpack.c.bf16 %v1134, %v1132
    %v1171 = vpack.c.bf16 %v1137, %v1135
    %v1172 = vpack.c.bf16 %v1138, %v1136
    %v1173 = vpack.c.bf16 %v1141, %v1139
    %v1174 = vpack.c.bf16 %v1142, %v1140
    %v1175 = vld [vmem:[#allocation9] sm:$0xf]
    %v1176 = vld [vmem:[#allocation9 + $0x4] sm:$0xf]
    %v1177 = vld [vmem:[#allocation9 + $0x8] sm:$0xf]
    %v1178 = vld [vmem:[#allocation9 + $0xc] sm:$0xf]
    %v1179 = vld [vmem:[#allocation9 + $0x10] sm:$0xf]
    %v1180 = vld [vmem:[#allocation9 + $0x14] sm:$0xf]
    %v1181 = vld [vmem:[#allocation9 + $0x18] sm:$0xf]
    %v1182 = vld [vmem:[#allocation9 + $0x1c] sm:$0xf]
    %v1183 = vld [vmem:[#allocation9 + $0x20] sm:$0xf]
    %v1184 = vld [vmem:[#allocation9 + $0x24] sm:$0xf]
    %v1185 = vld [vmem:[#allocation9 + $0x28] sm:$0xf]
    %v1186 = vld [vmem:[#allocation9 + $0x2c] sm:$0xf]
    %v1187 = vld [vmem:[#allocation9 + $0x30] sm:$0xf]
    %v1188 = vld [vmem:[#allocation9 + $0x34] sm:$0xf]
    %v1189 = vld [vmem:[#allocation9 + $0x38] sm:$0xf]
    %v1190 = vld [vmem:[#allocation9 + $0x3c] sm:$0xf]
    %v1191 = vld [vmem:[#allocation9 + $0x40] sm:$0xf]
    %v1192 = vld [vmem:[#allocation9 + $0x44] sm:$0xf]
    %v1193 = vld [vmem:[#allocation9 + $0x48] sm:$0xf]
    %v1194 = vld [vmem:[#allocation9 + $0x4c] sm:$0xf]
    %v1195 = vld [vmem:[#allocation9 + $0x50] sm:$0xf]
    %v1196 = vld [vmem:[#allocation9 + $0x54] sm:$0xf]
    %v1197 = vld [vmem:[#allocation9 + $0x58] sm:$0xf]
    %v1198 = vld [vmem:[#allocation9 + $0x5c] sm:$0xf]
    %v1199 = vld [vmem:[#allocation9 + $0x60] sm:$0xf]
    %v1200 = vld [vmem:[#allocation9 + $0x64] sm:$0xf]
    %v1201 = vld [vmem:[#allocation9 + $0x68] sm:$0xf]
    %v1202 = vld [vmem:[#allocation9 + $0x6c] sm:$0xf]
    %v1203 = vld [vmem:[#allocation9 + $0x70] sm:$0xf]
    %v1204 = vld [vmem:[#allocation9 + $0x74] sm:$0xf]
    %v1205 = vld [vmem:[#allocation9 + $0x78] sm:$0xf]
    %v1206 = vld [vmem:[#allocation9 + $0x7c] sm:$0xf]
    %v1207 = vld [vmem:[%s6] sm:$0x1]
    %v1209 = vlaneseq
    %v1210 = vshrl.u32 %v1209, 7
    %v1211 = vsub.s32 0, %v1210
    %v1212 = vrot.slane %v1207, %v1211
    %v1246 = vunpack.c.l.b16 %v1175
    %v1247 = vunpack.c.l.b16 %v1176
    %v1248 = vunpack.c.l.b16 %v1177
    %v1249 = vunpack.c.l.b16 %v1178
    %v1250 = vunpack.c.l.b16 %v1179
    %v1251 = vunpack.c.l.b16 %v1180
    %v1252 = vunpack.c.l.b16 %v1181
    %v1253 = vunpack.c.l.b16 %v1182
    %v1254 = vunpack.c.l.b16 %v1183
    %v1255 = vunpack.c.l.b16 %v1184
    %v1256 = vunpack.c.l.b16 %v1185
    %v1257 = vunpack.c.l.b16 %v1186
    %v1258 = vunpack.c.l.b16 %v1187
    %v1259 = vunpack.c.l.b16 %v1188
    %v1260 = vunpack.c.l.b16 %v1189
    %v1261 = vunpack.c.l.b16 %v1190
    %v1262 = vunpack.c.l.b16 %v1191
    %v1263 = vunpack.c.l.b16 %v1192
    %v1264 = vunpack.c.l.b16 %v1193
    %v1265 = vunpack.c.l.b16 %v1194
    %v1266 = vunpack.c.l.b16 %v1195
    %v1267 = vunpack.c.l.b16 %v1196
    %v1268 = vunpack.c.l.b16 %v1197
    %v1269 = vunpack.c.l.b16 %v1198
    %v1270 = vunpack.c.l.b16 %v1199
    %v1271 = vunpack.c.l.b16 %v1200
    %v1272 = vunpack.c.l.b16 %v1201
    %v1273 = vunpack.c.l.b16 %v1202
    %v1274 = vunpack.c.l.b16 %v1203
    %v1275 = vunpack.c.l.b16 %v1204
    %v1276 = vunpack.c.l.b16 %v1205
    %v1277 = vunpack.c.l.b16 %v1206
    %v1278 = vpack.c.b16 %v1247, %v1246
    %v1279 = vpack.c.b16 %v1249, %v1248
    %v1280 = vpack.c.b16 %v1251, %v1250
    %v1281 = vpack.c.b16 %v1253, %v1252
    %v1282 = vpack.c.b16 %v1255, %v1254
    %v1283 = vpack.c.b16 %v1257, %v1256
    %v1284 = vpack.c.b16 %v1259, %v1258
    %v1285 = vpack.c.b16 %v1261, %v1260
    %v1286 = vpack.c.b16 %v1263, %v1262
    %v1287 = vpack.c.b16 %v1265, %v1264
    %v1288 = vpack.c.b16 %v1267, %v1266
    %v1289 = vpack.c.b16 %v1269, %v1268
    %v1290 = vpack.c.b16 %v1271, %v1270
    %v1291 = vpack.c.b16 %v1273, %v1272
    %v1292 = vpack.c.b16 %v1275, %v1274
    %v1293 = vpack.c.b16 %v1277, %v1276
    %1310 = vmatprep.subr.bf16.mxu0 0
    %1311 = vmatpush1.bf16.msra.mxu0 %v1285
    %1312 = vmatprep.subr.bf16.mxu0 0
    %1313 = vmatpush1.bf16.msra.mxu0 %v1284
    %1314 = vmatprep.subr.bf16.mxu0 0
    %1315 = vmatpush1.bf16.msra.mxu0 %v1283
    %1316 = vmatprep.subr.bf16.mxu0 0
    %1317 = vmatpush1.bf16.msra.mxu0 %v1282
    %1318 = vmatprep.subr.bf16.mxu0 0
    %1319 = vmatpush1.bf16.msra.mxu0 %v1281
    %1320 = vmatprep.subr.bf16.mxu0 0
    %1321 = vmatpush1.bf16.msra.mxu0 %v1280
    %1322 = vmatprep.subr.bf16.mxu0 0
    %1323 = vmatpush1.bf16.msra.mxu0 %v1279
    %1324 = vmatprep.subr.bf16.mxu0 0
    %1325 = vmatpush1.bf16.msra.mxu0 %v1278
    %1326 = vmatprep.subr.bf16.mxu0 0
    %1327 = vmatpush2.bf16.msra.mxu0 %v1293
    %1328 = vmatprep.subr.bf16.mxu0 0
    %1329 = vmatpush2.bf16.msra.mxu0 %v1292
    %1330 = vmatprep.subr.bf16.mxu0 0
    %1331 = vmatpush2.bf16.msra.mxu0 %v1291
    %1332 = vmatprep.subr.bf16.mxu0 0
    %1333 = vmatpush2.bf16.msra.mxu0 %v1290
    %1334 = vmatprep.subr.bf16.mxu0 0
    %1335 = vmatpush2.bf16.msra.mxu0 %v1289
    %1336 = vmatprep.subr.bf16.mxu0 0
    %1337 = vmatpush2.bf16.msra.mxu0 %v1288
    %1338 = vmatprep.subr.bf16.mxu0 0
    %1339 = vmatpush2.bf16.msra.mxu0 %v1287
    %1340 = vmatprep.subr.bf16.mxu0 0
    %1341 = vmatpush2.bf16.msra.mxu0 %v1286
    %1342 = vmatprep.mubr.bf16.mxu0 %v1144
    %1343 = vmatmul.mubr.bf16.gmra.mxu0 %v1143
    %v1344 = vpop.f32.mrf.mxu0
    %v1345 = vadd.f32 %v1212, %v1344
    %v1346 = vpop.f32.mrf.mxu0
    %v1347 = vpop.f32.mrf.mxu0
    %v1348 = vadd.f32 %v1212, %v1347
    %v1349 = vpop.f32.mrf.mxu0
    %1350 = vmatprep.mubr.bf16.mxu0 %v1146
    %1351 = vmatmul.mubr.bf16.gmra.mxu0 %v1145
    %v1352 = vpop.f32.mrf.mxu0
    %v1353 = vadd.f32 %v1212, %v1352
    %v1354 = vpop.f32.mrf.mxu0
    %v1355 = vpop.f32.mrf.mxu0
    %v1356 = vadd.f32 %v1212, %v1355
    %v1357 = vpop.f32.mrf.mxu0
    %1358 = vmatprep.mubr.bf16.mxu0 %v1148
    %1359 = vmatmul.mubr.bf16.gmra.mxu0 %v1147
    %v1360 = vpop.f32.mrf.mxu0
    %v1361 = vadd.f32 %v1212, %v1360
    %v1362 = vpop.f32.mrf.mxu0
    %v1363 = vpop.f32.mrf.mxu0
    %v1364 = vadd.f32 %v1212, %v1363
    %v1365 = vpop.f32.mrf.mxu0
    %1366 = vmatprep.mubr.bf16.mxu0 %v1150
    %1367 = vmatmul.mubr.bf16.gmra.mxu0 %v1149
    %v1368 = vpop.f32.mrf.mxu0
    %v1369 = vadd.f32 %v1212, %v1368
    %v1370 = vpop.f32.mrf.mxu0
    %v1371 = vpop.f32.mrf.mxu0
    %v1372 = vadd.f32 %v1212, %v1371
    %v1373 = vpop.f32.mrf.mxu0
    %1374 = vmatprep.mubr.bf16.mxu0 %v1152
    %1375 = vmatmul.mubr.bf16.gmra.mxu0 %v1151
    %v1376 = vpop.f32.mrf.mxu0
    %v1377 = vadd.f32 %v1212, %v1376
    %v1378 = vpop.f32.mrf.mxu0
    %v1379 = vpop.f32.mrf.mxu0
    %v1380 = vadd.f32 %v1212, %v1379
    %v1381 = vpop.f32.mrf.mxu0
    %1382 = vmatprep.mubr.bf16.mxu0 %v1154
    %1383 = vmatmul.mubr.bf16.gmra.mxu0 %v1153
    %v1384 = vpop.f32.mrf.mxu0
    %v1385 = vadd.f32 %v1212, %v1384
    %v1386 = vpop.f32.mrf.mxu0
    %v1387 = vpop.f32.mrf.mxu0
    %v1388 = vadd.f32 %v1212, %v1387
    %v1389 = vpop.f32.mrf.mxu0
    %1390 = vmatprep.mubr.bf16.mxu0 %v1156
    %1391 = vmatmul.mubr.bf16.gmra.mxu0 %v1155
    %v1392 = vpop.f32.mrf.mxu0
    %v1393 = vadd.f32 %v1212, %v1392
    %v1394 = vpop.f32.mrf.mxu0
    %v1395 = vpop.f32.mrf.mxu0
    %v1396 = vadd.f32 %v1212, %v1395
    %v1397 = vpop.f32.mrf.mxu0
    %1398 = vmatprep.mubr.bf16.mxu0 %v1158
    %1399 = vmatmul.mubr.bf16.gmra.mxu0 %v1157
    %v1400 = vpop.f32.mrf.mxu0
    %v1401 = vadd.f32 %v1212, %v1400
    %v1402 = vpop.f32.mrf.mxu0
    %v1403 = vpop.f32.mrf.mxu0
    %v1404 = vadd.f32 %v1212, %v1403
    %v1405 = vpop.f32.mrf.mxu0
    %1406 = vmatprep.mubr.bf16.mxu0 %v1160
    %1407 = vmatmul.mubr.bf16.gmra.mxu0 %v1159
    %v1408 = vpop.f32.mrf.mxu0
    %v1409 = vadd.f32 %v1212, %v1408
    %v1410 = vpop.f32.mrf.mxu0
    %v1411 = vpop.f32.mrf.mxu0
    %v1412 = vadd.f32 %v1212, %v1411
    %v1413 = vpop.f32.mrf.mxu0
    %1414 = vmatprep.mubr.bf16.mxu0 %v1162
    %1415 = vmatmul.mubr.bf16.gmra.mxu0 %v1161
    %v1416 = vpop.f32.mrf.mxu0
    %v1417 = vadd.f32 %v1212, %v1416
    %v1418 = vpop.f32.mrf.mxu0
    %v1419 = vpop.f32.mrf.mxu0
    %v1420 = vadd.f32 %v1212, %v1419
    %v1421 = vpop.f32.mrf.mxu0
    %1422 = vmatprep.mubr.bf16.mxu0 %v1164
    %1423 = vmatmul.mubr.bf16.gmra.mxu0 %v1163
    %v1424 = vpop.f32.mrf.mxu0
    %v1425 = vadd.f32 %v1212, %v1424
    %v1426 = vpop.f32.mrf.mxu0
    %v1427 = vpop.f32.mrf.mxu0
    %v1428 = vadd.f32 %v1212, %v1427
    %v1429 = vpop.f32.mrf.mxu0
    %1430 = vmatprep.mubr.bf16.mxu0 %v1166
    %1431 = vmatmul.mubr.bf16.gmra.mxu0 %v1165
    %v1432 = vpop.f32.mrf.mxu0
    %v1433 = vadd.f32 %v1212, %v1432
    %v1434 = vpop.f32.mrf.mxu0
    %v1435 = vpop.f32.mrf.mxu0
    %v1436 = vadd.f32 %v1212, %v1435
    %v1437 = vpop.f32.mrf.mxu0
    %1438 = vmatprep.mubr.bf16.mxu0 %v1168
    %1439 = vmatmul.mubr.bf16.gmra.mxu0 %v1167
    %v1440 = vpop.f32.mrf.mxu0
    %v1441 = vadd.f32 %v1212, %v1440
    %v1442 = vpop.f32.mrf.mxu0
    %v1443 = vpop.f32.mrf.mxu0
    %v1444 = vadd.f32 %v1212, %v1443
    %v1445 = vpop.f32.mrf.mxu0
    %1446 = vmatprep.mubr.bf16.mxu0 %v1170
    %1447 = vmatmul.mubr.bf16.gmra.mxu0 %v1169
    %v1448 = vpop.f32.mrf.mxu0
    %v1449 = vadd.f32 %v1212, %v1448
    %v1450 = vpop.f32.mrf.mxu0
    %v1451 = vpop.f32.mrf.mxu0
    %v1452 = vadd.f32 %v1212, %v1451
    %v1453 = vpop.f32.mrf.mxu0
    %1454 = vmatprep.mubr.bf16.mxu0 %v1172
    %1455 = vmatmul.mubr.bf16.gmra.mxu0 %v1171
    %v1456 = vpop.f32.mrf.mxu0
    %v1457 = vadd.f32 %v1212, %v1456
    %v1458 = vpop.f32.mrf.mxu0
    %v1459 = vpop.f32.mrf.mxu0
    %v1460 = vadd.f32 %v1212, %v1459
    %v1461 = vpop.f32.mrf.mxu0
    %1462 = vmatprep.mubr.bf16.mxu0 %v1174
    %1463 = vmatmul.mubr.bf16.gmra.mxu0 %v1173
    %v1464 = vpop.f32.mrf.mxu0
    %v1465 = vadd.f32 %v1212, %v1464
    %v1466 = vpop.f32.mrf.mxu0
    %v1467 = vpop.f32.mrf.mxu0
    %v1468 = vadd.f32 %v1212, %v1467
    %v1469 = vpop.f32.mrf.mxu0
    %1470 = vdwg.mxu0
    %v1471 = vxor.u32 %v1345, 2147483648
    %v1472 = vxor.u32 %v1348, 2147483648
    %v1473 = vxor.u32 %v1353, 2147483648
    %v1474 = vxor.u32 %v1356, 2147483648
    %v1475 = vxor.u32 %v1361, 2147483648
    %v1476 = vxor.u32 %v1364, 2147483648
    %v1477 = vxor.u32 %v1369, 2147483648
    %v1478 = vxor.u32 %v1372, 2147483648
    %v1479 = vxor.u32 %v1377, 2147483648
    %v1480 = vxor.u32 %v1380, 2147483648
    %v1481 = vxor.u32 %v1385, 2147483648
    %v1482 = vxor.u32 %v1388, 2147483648
    %v1483 = vxor.u32 %v1393, 2147483648
    %v1484 = vxor.u32 %v1396, 2147483648
    %v1485 = vxor.u32 %v1401, 2147483648
    %v1486 = vxor.u32 %v1404, 2147483648
    %v1487 = vxor.u32 %v1409, 2147483648
    %v1488 = vxor.u32 %v1412, 2147483648
    %v1489 = vxor.u32 %v1417, 2147483648
    %v1490 = vxor.u32 %v1420, 2147483648
    %v1491 = vxor.u32 %v1425, 2147483648
    %v1492 = vxor.u32 %v1428, 2147483648
    %v1493 = vxor.u32 %v1433, 2147483648
    %v1494 = vxor.u32 %v1436, 2147483648
    %v1495 = vxor.u32 %v1441, 2147483648
    %v1496 = vxor.u32 %v1444, 2147483648
    %v1497 = vxor.u32 %v1449, 2147483648
    %v1498 = vxor.u32 %v1452, 2147483648
    %v1499 = vxor.u32 %v1457, 2147483648
    %v1500 = vxor.u32 %v1460, 2147483648
    %v1501 = vxor.u32 %v1465, 2147483648
    %v1502 = vxor.u32 %v1468, 2147483648
    %v1503 = vmul.f32 %v1471, 1.442695
    %v1504 = vpow.pop %v1503
    %v1505 = vmul.f32 %v1472, 1.442695
    %v1506 = vpow.pop %v1505
    %v1507 = vmul.f32 %v1473, 1.442695
    %v1508 = vpow.pop %v1507
    %v1509 = vmul.f32 %v1474, 1.442695
    %v1510 = vpow.pop %v1509
    %v1511 = vmul.f32 %v1475, 1.442695
    %v1512 = vpow.pop %v1511
    %v1513 = vmul.f32 %v1476, 1.442695
    %v1514 = vpow.pop %v1513
    %v1515 = vmul.f32 %v1477, 1.442695
    %v1516 = vpow.pop %v1515
    %v1517 = vmul.f32 %v1478, 1.442695
    %v1518 = vpow.pop %v1517
    %v1519 = vmul.f32 %v1479, 1.442695
    %v1520 = vpow.pop %v1519
    %v1521 = vmul.f32 %v1480, 1.442695
    %v1522 = vpow.pop %v1521
    %v1523 = vmul.f32 %v1481, 1.442695
    %v1524 = vpow.pop %v1523
    %v1525 = vmul.f32 %v1482, 1.442695
    %v1526 = vpow.pop %v1525
    %v1527 = vmul.f32 %v1483, 1.442695
    %v1528 = vpow.pop %v1527
    %v1529 = vmul.f32 %v1484, 1.442695
    %v1530 = vpow.pop %v1529
    %v1531 = vmul.f32 %v1485, 1.442695
    %v1532 = vpow.pop %v1531
    %v1533 = vmul.f32 %v1486, 1.442695
    %v1534 = vpow.pop %v1533
    %v1535 = vmul.f32 %v1487, 1.442695
    %v1536 = vpow.pop %v1535
    %v1537 = vmul.f32 %v1488, 1.442695
    %v1538 = vpow.pop %v1537
    %v1539 = vmul.f32 %v1489, 1.442695
    %v1540 = vpow.pop %v1539
    %v1541 = vmul.f32 %v1490, 1.442695
    %v1542 = vpow.pop %v1541
    %v1543 = vmul.f32 %v1491, 1.442695
    %v1544 = vpow.pop %v1543
    %v1545 = vmul.f32 %v1492, 1.442695
    %v1546 = vpow.pop %v1545
    %v1547 = vmul.f32 %v1493, 1.442695
    %v1548 = vpow.pop %v1547
    %v1549 = vmul.f32 %v1494, 1.442695
    %v1550 = vpow.pop %v1549
    %v1551 = vmul.f32 %v1495, 1.442695
    %v1552 = vpow.pop %v1551
    %v1553 = vmul.f32 %v1496, 1.442695
    %v1554 = vpow.pop %v1553
    %v1555 = vmul.f32 %v1497, 1.442695
    %v1556 = vpow.pop %v1555
    %v1557 = vmul.f32 %v1498, 1.442695
    %v1558 = vpow.pop %v1557
    %v1559 = vmul.f32 %v1499, 1.442695
    %v1560 = vpow.pop %v1559
    %v1561 = vmul.f32 %v1500, 1.442695
    %v1562 = vpow.pop %v1561
    %v1563 = vmul.f32 %v1501, 1.442695
    %v1564 = vpow.pop %v1563
    %v1565 = vmul.f32 %v1502, 1.442695
    %v1566 = vpow.pop %v1565
    %v1567 = vadd.f32 %v1504, 1.0
    %v1568 = vadd.f32 %v1506, 1.0
    %v1569 = vadd.f32 %v1508, 1.0
    %v1570 = vadd.f32 %v1510, 1.0
    %v1571 = vadd.f32 %v1512, 1.0
    %v1572 = vadd.f32 %v1514, 1.0
    %v1573 = vadd.f32 %v1516, 1.0
    %v1574 = vadd.f32 %v1518, 1.0
    %v1575 = vadd.f32 %v1520, 1.0
    %v1576 = vadd.f32 %v1522, 1.0
    %v1577 = vadd.f32 %v1524, 1.0
    %v1578 = vadd.f32 %v1526, 1.0
    %v1579 = vadd.f32 %v1528, 1.0
    %v1580 = vadd.f32 %v1530, 1.0
    %v1581 = vadd.f32 %v1532, 1.0
    %v1582 = vadd.f32 %v1534, 1.0
    %v1583 = vadd.f32 %v1536, 1.0
    %v1584 = vadd.f32 %v1538, 1.0
    %v1585 = vadd.f32 %v1540, 1.0
    %v1586 = vadd.f32 %v1542, 1.0
    %v1587 = vadd.f32 %v1544, 1.0
    %v1588 = vadd.f32 %v1546, 1.0
    %v1589 = vadd.f32 %v1548, 1.0
    %v1590 = vadd.f32 %v1550, 1.0
    %v1591 = vadd.f32 %v1552, 1.0
    %v1592 = vadd.f32 %v1554, 1.0
    %v1593 = vadd.f32 %v1556, 1.0
    %v1594 = vadd.f32 %v1558, 1.0
    %v1595 = vadd.f32 %v1560, 1.0
    %v1596 = vadd.f32 %v1562, 1.0
    %v1597 = vadd.f32 %v1564, 1.0
    %v1598 = vadd.f32 %v1566, 1.0
    %v1599 = vrcp.pop %v1567
    %v1600 = vmul.f32 1.0, %v1599
    %v1601 = vrcp.pop %v1568
    %v1602 = vmul.f32 1.0, %v1601
    %v1603 = vrcp.pop %v1569
    %v1604 = vmul.f32 1.0, %v1603
    %v1605 = vrcp.pop %v1570
    %v1606 = vmul.f32 1.0, %v1605
    %v1607 = vrcp.pop %v1571
    %v1608 = vmul.f32 1.0, %v1607
    %v1609 = vrcp.pop %v1572
    %v1610 = vmul.f32 1.0, %v1609
    %v1611 = vrcp.pop %v1573
    %v1612 = vmul.f32 1.0, %v1611
    %v1613 = vrcp.pop %v1574
    %v1614 = vmul.f32 1.0, %v1613
    %v1615 = vrcp.pop %v1575
    %v1616 = vmul.f32 1.0, %v1615
    %v1617 = vrcp.pop %v1576
    %v1618 = vmul.f32 1.0, %v1617
    %v1619 = vrcp.pop %v1577
    %v1620 = vmul.f32 1.0, %v1619
    %v1621 = vrcp.pop %v1578
    %v1622 = vmul.f32 1.0, %v1621
    %v1623 = vrcp.pop %v1579
    %v1624 = vmul.f32 1.0, %v1623
    %v1625 = vrcp.pop %v1580
    %v1626 = vmul.f32 1.0, %v1625
    %v1627 = vrcp.pop %v1581
    %v1628 = vmul.f32 1.0, %v1627
    %v1629 = vrcp.pop %v1582
    %v1630 = vmul.f32 1.0, %v1629
    %v1631 = vrcp.pop %v1583
    %v1632 = vmul.f32 1.0, %v1631
    %v1633 = vrcp.pop %v1584
    %v1634 = vmul.f32 1.0, %v1633
    %v1635 = vrcp.pop %v1585
    %v1636 = vmul.f32 1.0, %v1635
    %v1637 = vrcp.pop %v1586
    %v1638 = vmul.f32 1.0, %v1637
    %v1639 = vrcp.pop %v1587
    %v1640 = vmul.f32 1.0, %v1639
    %v1641 = vrcp.pop %v1588
    %v1642 = vmul.f32 1.0, %v1641
    %v1643 = vrcp.pop %v1589
    %v1644 = vmul.f32 1.0, %v1643
    %v1645 = vrcp.pop %v1590
    %v1646 = vmul.f32 1.0, %v1645
    %v1647 = vrcp.pop %v1591
    %v1648 = vmul.f32 1.0, %v1647
    %v1649 = vrcp.pop %v1592
    %v1650 = vmul.f32 1.0, %v1649
    %v1651 = vrcp.pop %v1593
    %v1652 = vmul.f32 1.0, %v1651
    %v1653 = vrcp.pop %v1594
    %v1654 = vmul.f32 1.0, %v1653
    %v1655 = vrcp.pop %v1595
    %v1656 = vmul.f32 1.0, %v1655
    %v1657 = vrcp.pop %v1596
    %v1658 = vmul.f32 1.0, %v1657
    %v1659 = vrcp.pop %v1597
    %v1660 = vmul.f32 1.0, %v1659
    %v1661 = vrcp.pop %v1598
    %v1662 = vmul.f32 1.0, %v1661
    %1663 = vst [vmem:[%s7] sm:$0xff] %v1600
    %1664 = vst [vmem:[%s7 + $0x8] sm:$0xff] %v1602
    %1665 = vst [vmem:[%s7 + $0x10] sm:$0xff] %v1604
    %1666 = vst [vmem:[%s7 + $0x18] sm:$0xff] %v1606
    %1667 = vst [vmem:[%s7 + $0x20] sm:$0xff] %v1608
    %1668 = vst [vmem:[%s7 + $0x28] sm:$0xff] %v1610
    %1669 = vst [vmem:[%s7 + $0x30] sm:$0xff] %v1612
    %1670 = vst [vmem:[%s7 + $0x38] sm:$0xff] %v1614
    %1671 = vst [vmem:[%s7 + $0x40] sm:$0xff] %v1616
    %1672 = vst [vmem:[%s7 + $0x48] sm:$0xff] %v1618
    %1673 = vst [vmem:[%s7 + $0x50] sm:$0xff] %v1620
    %1674 = vst [vmem:[%s7 + $0x58] sm:$0xff] %v1622
    %1675 = vst [vmem:[%s7 + $0x60] sm:$0xff] %v1624
    %1676 = vst [vmem:[%s7 + $0x68] sm:$0xff] %v1626
    %1677 = vst [vmem:[%s7 + $0x70] sm:$0xff] %v1628
    %1678 = vst [vmem:[%s7 + $0x78] sm:$0xff] %v1630
    %1679 = vst [vmem:[%s7 + $0x80] sm:$0xff] %v1632
    %1680 = vst [vmem:[%s7 + $0x88] sm:$0xff] %v1634
    %1681 = vst [vmem:[%s7 + $0x90] sm:$0xff] %v1636
    %1682 = vst [vmem:[%s7 + $0x98] sm:$0xff] %v1638
    %1683 = vst [vmem:[%s7 + $0xa0] sm:$0xff] %v1640
    %1684 = vst [vmem:[%s7 + $0xa8] sm:$0xff] %v1642
    %1685 = vst [vmem:[%s7 + $0xb0] sm:$0xff] %v1644
    %1686 = vst [vmem:[%s7 + $0xb8] sm:$0xff] %v1646
    %1687 = vst [vmem:[%s7 + $0xc0] sm:$0xff] %v1648
    %1688 = vst [vmem:[%s7 + $0xc8] sm:$0xff] %v1650
    %1689 = vst [vmem:[%s7 + $0xd0] sm:$0xff] %v1652
    %1690 = vst [vmem:[%s7 + $0xd8] sm:$0xff] %v1654
    %1691 = vst [vmem:[%s7 + $0xe0] sm:$0xff] %v1656
    %1692 = vst [vmem:[%s7 + $0xe8] sm:$0xff] %v1658
    %1693 = vst [vmem:[%s7 + $0xf0] sm:$0xff] %v1660
    %1694 = vst [vmem:[%s7 + $0xf8] sm:$0xff] %v1662
    // Predicated region
    $region50: #{sigmoid_prop_net.1} parent=1 // pred_check
      _
    $region51: #{sigmoid_prop_net.1} parent=1 // pred_check_branch
      %1696 = sbr.rel (0) target = $region53
    $region52: #{sigmoid_prop_net.1} parent=1 // pred_region
      _
    $region53: #{sigmoid_prop_net.1} parent=1 // pred_fallthru
      _
    // Predicated region
    $region54: #{sigmoid_prop_net.1} parent=1 // pred_check
      _
    $region55: #{sigmoid_prop_net.1} parent=1 // pred_check_branch
      %1698 = sbr.rel (0) target = $region57
    $region56: #{sigmoid_prop_net.1} parent=1 // pred_region
      _
    $region57: #{sigmoid_prop_net.1} parent=1 // pred_fallthru
      _
    %1699 = vsyncpa [#allocation3], 1
    %1700 = vsyncpa [#allocation5], 1
    %1701 = vsyncpa [#allocation8], 1

</llo_original>
